<compile_context>
chip_gen: v5e
topology: v5e:2x2
jax: 0.10.0
libtpu: 0.0.40
codegen_flags: <defaults>
</compile_context>

<pallas_src>
import jax
import jax.numpy as jnp
from jax.experimental import pallas as pl
from jax.experimental.pallas import tpu as pltpu

IN = 4       # input features
H1 = 128     # first hidden width
H2 = 64      # second hidden width
A, V = 2, 1  # action / value head widths
HO = 8       # fused head rows (A + V = 3, padded to 8 sublanes)

_HIGH = jax.lax.Precision.HIGHEST


def _round_up(n, m):
    return ((n + m - 1) // m) * m


def policy_kernel(xT_ref, w1t_ref, w2t_ref, wht_ref, b_ref, outT_ref):
    # Transposed MLP for one batch tile; all parameter tiles are VMEM-resident.
    xT = xT_ref[...]                                     # (4, TB)  lane-dense

    b1 = b_ref[:, 0:1]                                   # (128, 1)
    b2 = b_ref[0:H2, 1:2]                                # (64, 1)
    bh = b_ref[0:HO, 2:3]                                # (8, 1), rows 3: are 0

    h1 = jnp.dot(w1t_ref[...], xT,
                 preferred_element_type=jnp.float32, precision=_HIGH) + b1
    h1 = jnp.maximum(h1, 0.0)                            # (128, TB)

    h2 = jnp.dot(w2t_ref[...], h1,
                 preferred_element_type=jnp.float32, precision=_HIGH) + b2
    h2 = jnp.maximum(h2, 0.0)                            # (64, TB)

    # Fused action|value head; rows 3: of the result are just the (zero) bias.
    outT_ref[...] = jnp.dot(wht_ref[...], h2,
                            preferred_element_type=jnp.float32,
                            precision=_HIGH) + bh        # (8, TB)


def policy_forward(x, packed_params, *, max_tile=4096, split_threshold=512):
    """x: (B, 4) f32 -> (action (B, 2), value (B, 1))."""
    w1t, w2t, wht, biases = packed_params
    B = x.shape[0]

    if B < split_threshold:
        # Single grid step; block shapes equal full array dims (always legal).
        TB, Bp = B, B
        xT = x.T
    else:
        # >= 2 grid steps (so v7x's two TensorCores both get work), tile a
        # multiple of 256 (v6e/v7x MXU alignment), capped at max_tile.
        TB = min(max_tile, _round_up(pl.cdiv(_round_up(B, 256), 2), 256))
        Bp = TB * pl.cdiv(B, TB)
        xp = x if Bp == B else jnp.pad(x, ((0, Bp - B), (0, 0)))
        xT = xp.T

    resident = pl.Buffered(1)  # constant-index params: DMA once, stay resident

    outT = pl.pallas_call(
        policy_kernel,
        out_shape=jax.ShapeDtypeStruct((HO, Bp), jnp.float32),
        grid_spec=pltpu.PrefetchScalarGridSpec(
            num_scalar_prefetch=0,
            grid=(Bp // TB,),
            in_specs=[
                pl.BlockSpec((IN, TB), lambda i: (0, i)),                         # x^T tile
                pl.BlockSpec((H1, IN), lambda i: (0, 0), pipeline_mode=resident),  # W1^T
                pl.BlockSpec((H2, H1), lambda i: (0, 0), pipeline_mode=resident),  # W2^T
                pl.BlockSpec((HO, H2), lambda i: (0, 0), pipeline_mode=resident),  # fused head^T
                pl.BlockSpec((H1, 3), lambda i: (0, 0), pipeline_mode=resident),   # packed biases
            ],
            out_specs=pl.BlockSpec((HO, TB), lambda i: (0, i)),                    # (8, TB) slab
        ),
        compiler_params=pltpu.CompilerParams(
            dimension_semantics=("parallel",),
        ),
    )(xT, w1t, w2t, wht, biases)

    # One contiguous row slice, then split action / value in the wrapper.
    y = outT[:A + V, :B].T                               # (B, 3)
    return y[:, :A], y[:, A:A + V]


def init_params(key):
    """Deterministic synthetic parameters matching the torch module's shapes."""
    ks = jax.random.split(key, 8)

    def linear(kw, kb, fan_in, fan_out):
        # torch default init: U(-1/sqrt(fan_in), 1/sqrt(fan_in))
        bound = 1.0 / jnp.sqrt(fan_in)
        w = jax.random.uniform(kw, (fan_in, fan_out), jnp.float32, -bound, bound)
        b = jax.random.uniform(kb, (fan_out,), jnp.float32, -bound, bound)
        return w, b

    w1, b1 = linear(ks[0], ks[1], IN, H1)
    w2, b2 = linear(ks[2], ks[3], H1, H2)
    wa, ba = linear(ks[4], ks[5], H2, A)
    wv, bv = linear(ks[6], ks[7], H2, V)
    return (w1, b1, w2, b2, wa, ba, wv, bv)


def pack_params(params):
    """One-time packing of the 8 torch-style params into 4 transposed kernel arrays."""
    w1, b1, w2, b2, wa, ba, wv, bv = params

    w1t = jnp.asarray(w1.T, jnp.float32)                 # (128, 4)
    w2t = jnp.asarray(w2.T, jnp.float32)                 # (64, 128)

    wht = jnp.zeros((HO, H2), jnp.float32)               # (8, 64)
    wht = wht.at[0:A, :].set(wa.T)                       # action rows 0:2
    wht = wht.at[A:A + V, :].set(wv.T)                   # value row 2

    biases = jnp.zeros((H1, 3), jnp.float32)             # column vectors
    biases = biases.at[:, 0].set(b1)                     # (128,) -> col 0
    biases = biases.at[:H2, 1].set(b2)                   # (64,)  -> col 1
    biases = biases.at[0:A, 2].set(ba)                   # (2,)   -> col 2
    biases = biases.at[A:A + V, 2].set(bv)               # (1,)   -> col 2

    return w1t, w2t, wht, biases


def policy_reference(x, params):
    """Pure-JAX f32 reference (unpacked params, full-precision matmuls)."""
    w1, b1, w2, b2, wa, ba, wv, bv = params
    h = jnp.maximum(jnp.dot(x, w1, precision=_HIGH) + b1, 0.0)
    h = jnp.maximum(jnp.dot(h, w2, precision=_HIGH) + b2, 0.0)
    return (jnp.dot(h, wa, precision=_HIGH) + ba,
            jnp.dot(h, wv, precision=_HIGH) + bv)


# TODO(synk): the torch module's `saved_actions` / `rewards` lists are training-side
# bookkeeping, not part of the forward pass, so they have no kernel equivalent.

if __name__ == "__main__":
    key = jax.random.PRNGKey(0)
    kx, kp = jax.random.split(key)

    B = 8  # small batch; input features fixed at 4 by the module
    x = jax.random.normal(kx, (B, IN), dtype=jnp.float32)
    params = init_params(kp)
    packed = pack_params(params)

    action, value = policy_forward(x, packed)
    jax.block_until_ready((action, value))

    ref_action, ref_value = policy_reference(x, params)
    assert action.shape == (B, A) and value.shape == (B, V)
    assert jnp.allclose(action, ref_action, atol=1e-5, rtol=1e-5)
    assert jnp.allclose(value, ref_value, atol=1e-5, rtol=1e-5)

    print("KERNEL_OK")
</pallas_src>

<mosaic_0001>
module attributes {stable_mosaic.version = 11 : i64} {
  func.func @policy_kernel(%arg0: i32, %arg1: memref<4x8xf32, #tpu.memory_space<vmem>>, %arg2: memref<128x4xf32, #tpu.memory_space<vmem>>, %arg3: memref<64x128xf32, #tpu.memory_space<vmem>>, %arg4: memref<8x64xf32, #tpu.memory_space<vmem>>, %arg5: memref<128x3xf32, #tpu.memory_space<vmem>>, %arg6: memref<8x8xf32, #tpu.memory_space<vmem>>) attributes {dimension_semantics = [#tpu.dimension_semantics<parallel>], iteration_bounds = array<i64: 1>, scalar_prefetch = 0 : i64, scratch_operands = 0 : i64, tpu.core_type = #tpu.core_type<tc>, window_params = [{transform_indices = @transform_0, window_bounds = array<i64: 4, 8>}, {pipeline_mode = #tpu.pipeline_mode<synchronous>, transform_indices = @transform_1, window_bounds = array<i64: 128, 4>}, {pipeline_mode = #tpu.pipeline_mode<synchronous>, transform_indices = @transform_2, window_bounds = array<i64: 64, 128>}, {pipeline_mode = #tpu.pipeline_mode<synchronous>, transform_indices = @transform_3, window_bounds = array<i64: 8, 64>}, {pipeline_mode = #tpu.pipeline_mode<synchronous>, transform_indices = @transform_4, window_bounds = array<i64: 128, 3>}, {transform_indices = @transform_5, window_bounds = array<i64: 8, 8>}]} {
    %c0 = arith.constant 0 : index
    %c0_0 = arith.constant 0 : index
    %0 = vector.load %arg1[%c0, %c0_0] : memref<4x8xf32, #tpu.memory_space<vmem>>, vector<4x8xf32>
    %c0_1 = arith.constant 0 : index
    %c0_2 = arith.constant 0 : index
    %1 = vector.load %arg5[%c0_1, %c0_2] : memref<128x3xf32, #tpu.memory_space<vmem>>, vector<128x1xf32>
    %c0_3 = arith.constant 0 : index
    %c1 = arith.constant 1 : index
    %2 = vector.load %arg5[%c0_3, %c1] : memref<128x3xf32, #tpu.memory_space<vmem>>, vector<64x1xf32>
    %c0_4 = arith.constant 0 : index
    %c2 = arith.constant 2 : index
    %3 = vector.load %arg5[%c0_4, %c2] : memref<128x3xf32, #tpu.memory_space<vmem>>, vector<8x1xf32>
    %c0_5 = arith.constant 0 : index
    %c0_6 = arith.constant 0 : index
    %4 = vector.load %arg2[%c0_5, %c0_6] : memref<128x4xf32, #tpu.memory_space<vmem>>, vector<128x4xf32>
    %cst = arith.constant dense<0.000000e+00> : vector<128x8xf32>
    %5 = tpu.matmul %4, %0, %cst {dimension_numbers = #tpu.dot_dimension_numbers<[1], [0], [0], [1], [0, 0, 1, 1], [], []>, precision = #tpu.contract_precision<fp32>} : vector<128x4xf32>, vector<4x8xf32>, vector<128x8xf32> -> vector<128x8xf32>
    %6 = vector.broadcast %1 : vector<128x1xf32> to vector<128x8xf32>
    %7 = arith.addf %5, %6 : vector<128x8xf32>
    %cst_7 = arith.constant 0.000000e+00 : f32
    %8 = vector.broadcast %cst_7 : f32 to vector<128x8xf32>
    %9 = arith.maximumf %7, %8 : vector<128x8xf32>
    %c0_8 = arith.constant 0 : index
    %c0_9 = arith.constant 0 : index
    %10 = vector.load %arg3[%c0_8, %c0_9] : memref<64x128xf32, #tpu.memory_space<vmem>>, vector<64x128xf32>
    %cst_10 = arith.constant dense<0.000000e+00> : vector<64x8xf32>
    %11 = tpu.matmul %10, %9, %cst_10 {dimension_numbers = #tpu.dot_dimension_numbers<[1], [0], [0], [1], [0, 0, 1, 1], [], []>, precision = #tpu.contract_precision<fp32>} : vector<64x128xf32>, vector<128x8xf32>, vector<64x8xf32> -> vector<64x8xf32>
    %12 = vector.broadcast %2 : vector<64x1xf32> to vector<64x8xf32>
    %13 = arith.addf %11, %12 : vector<64x8xf32>
    %cst_11 = arith.constant 0.000000e+00 : f32
    %14 = vector.broadcast %cst_11 : f32 to vector<64x8xf32>
    %15 = arith.maximumf %13, %14 : vector<64x8xf32>
    %c0_12 = arith.constant 0 : index
    %c0_13 = arith.constant 0 : index
    %16 = vector.load %arg4[%c0_12, %c0_13] : memref<8x64xf32, #tpu.memory_space<vmem>>, vector<8x64xf32>
    %cst_14 = arith.constant dense<0.000000e+00> : vector<8x8xf32>
    %17 = tpu.matmul %16, %15, %cst_14 {dimension_numbers = #tpu.dot_dimension_numbers<[1], [0], [0], [1], [0, 0, 1, 1], [], []>, precision = #tpu.contract_precision<fp32>} : vector<8x64xf32>, vector<64x8xf32>, vector<8x8xf32> -> vector<8x8xf32>
    %18 = vector.broadcast %3 : vector<8x1xf32> to vector<8x8xf32>
    %19 = arith.addf %17, %18 : vector<8x8xf32>
    %c0_15 = arith.constant 0 : index
    %c0_16 = arith.constant 0 : index
    %20 = vector.load %arg6[%c0_15, %c0_16] : memref<8x8xf32, #tpu.memory_space<vmem>>, vector<8x8xf32>
    tpu.vector_store %arg6[%c0_15, %c0_16], %19 {strides = array<i32>} : memref<8x8xf32, #tpu.memory_space<vmem>>, vector<8x8xf32>,
    return
  }
  func.func @transform_0(%arg0: i32) -> (i32, i32) {
    %c0_i32 = arith.constant 0 : i32
    %c0_i32_0 = arith.constant 0 : i32
    return %c0_i32, %arg0 : i32, i32
  }
  func.func @transform_1(%arg0: i32) -> (i32, i32) {
    %c0_i32 = arith.constant 0 : i32
    %c0_i32_0 = arith.constant 0 : i32
    %c0_i32_1 = arith.constant 0 : i32
    return %c0_i32, %c0_i32_0 : i32, i32
  }
  func.func @transform_2(%arg0: i32) -> (i32, i32) {
    %c0_i32 = arith.constant 0 : i32
    %c0_i32_0 = arith.constant 0 : i32
    %c0_i32_1 = arith.constant 0 : i32
    return %c0_i32, %c0_i32_0 : i32, i32
  }
  func.func @transform_3(%arg0: i32) -> (i32, i32) {
    %c0_i32 = arith.constant 0 : i32
    %c0_i32_0 = arith.constant 0 : i32
    %c0_i32_1 = arith.constant 0 : i32
    return %c0_i32, %c0_i32_0 : i32, i32
  }
  func.func @transform_4(%arg0: i32) -> (i32, i32) {
    %c0_i32 = arith.constant 0 : i32
    %c0_i32_0 = arith.constant 0 : i32
    %c0_i32_1 = arith.constant 0 : i32
    return %c0_i32, %c0_i32_0 : i32, i32
  }
  func.func @transform_5(%arg0: i32) -> (i32, i32) {
    %c0_i32 = arith.constant 0 : i32
    %c0_i32_0 = arith.constant 0 : i32
    return %c0_i32, %arg0 : i32, i32
  }
}

</mosaic_0001>

<llo_original>
// kernel: tpu_custom_call.1
$region0: #{tpu_custom_call.1}
  #allocation0 [shape = 'u32[]', space=smem, size = 0x4, offset = 0x4, fixed_abs, tag = 'smem constant byte address 0x4 - core index']
  #allocation1 [shape = 'u32[72,128]{1,0:T(1,128)}', space=vmem, size = 0x9000, scoped, tag = 'internal scratch']
  %s0 = inlined_call_operand.vmem [shape: f32[4,8], index: 0, kind: input, shape index: {}]
  %s1 = inlined_call_operand.vmem [shape: f32[128,4], index: 1, kind: input, shape index: {}]
  %s2 = inlined_call_operand.vmem [shape: f32[64,128], index: 2, kind: input, shape index: {}]
  %s3 = inlined_call_operand.vmem [shape: f32[8,64], index: 3, kind: input, shape index: {}]
  %s4 = inlined_call_operand.vmem [shape: f32[128,3], index: 4, kind: input, shape index: {}]
  %s5 = inlined_call_operand.hbm [shape: f32[8,8], index: 5, kind: output, shape index: {}]
  %s6 = sld [smem:[#allocation0]]
  $region30: #{tpu_custom_call.1} parent=0
    _
  %s8 = ssub.s32 1, %s6
  %s9 = scalar_select 0, %s8, %s6
  $region1: #{tpu_custom_call.1} parent=0
    #allocation2 [shape = 'u8[4096]{0}', space=vmem, size = 0x1000, scoped, tag = 'output window, operand 0, single buffered']
    #allocation3 [shape = 's32[1]{0}', space=sflag, size = 0x4, scoped, tag = 'scoped memory for tpu_custom_call.1']
    %10 = vsyncpa [#allocation3], 0
    // Predicated region
    $region2: #{tpu_custom_call.1} parent=1 // pred_check
      _
    $region3: #{tpu_custom_call.1} parent=1 // pred_check_branch
      %12 = sbr.rel (0) target = $region5
    $region4: #{tpu_custom_call.1} parent=1 // pred_region
      _
    $region5: #{tpu_custom_call.1} parent=1 // pred_fallthru
      _
    // Predicated region
    $region6: #{tpu_custom_call.1} parent=1 // pred_check
      _
    $region7: #{tpu_custom_call.1} parent=1 // pred_check_branch
      %14 = sbr.rel (0) target = $region9
    $region8: #{tpu_custom_call.1} parent=1 // pred_region
      _
    $region9: #{tpu_custom_call.1} parent=1 // pred_fallthru
      _
    // Predicated region
    $region10: #{tpu_custom_call.1} parent=1 // pred_check
      _
    $region11: #{tpu_custom_call.1} parent=1 // pred_check_branch
      %16 = sbr.rel (0) target = $region13
    $region12: #{tpu_custom_call.1} parent=1 // pred_region
      _
    $region13: #{tpu_custom_call.1} parent=1 // pred_fallthru
      _
    // Predicated region
    $region14: #{tpu_custom_call.1} parent=1 // pred_check
      _
    $region15: #{tpu_custom_call.1} parent=1 // pred_check_branch
      %18 = sbr.rel (0) target = $region17
    $region16: #{tpu_custom_call.1} parent=1 // pred_region
      _
    $region17: #{tpu_custom_call.1} parent=1 // pred_fallthru
      _
    // Predicated region
    $region18: #{tpu_custom_call.1} parent=1 // pred_check
      _
    $region19: #{tpu_custom_call.1} parent=1 // pred_check_branch
      %20 = sbr.rel (0) target = $region21
    $region20: #{tpu_custom_call.1} parent=1 // pred_region
      _
    $region21: #{tpu_custom_call.1} parent=1 // pred_fallthru
      _
    %v21 = vld [vmem:[%s0] sm:$0xf]
    %v22 = vld [vmem:[%s4] sm:$0xff]
    %v23 = vld [vmem:[%s4 + $0x8] sm:$0xff]
    %v24 = vld [vmem:[%s4 + $0x10] sm:$0xff]
    %v25 = vld [vmem:[%s4 + $0x18] sm:$0xff]
    %v26 = vld [vmem:[%s4 + $0x20] sm:$0xff]
    %v27 = vld [vmem:[%s4 + $0x28] sm:$0xff]
    %v28 = vld [vmem:[%s4 + $0x30] sm:$0xff]
    %v29 = vld [vmem:[%s4 + $0x38] sm:$0xff]
    %v30 = vld [vmem:[%s4 + $0x40] sm:$0xff]
    %v31 = vld [vmem:[%s4 + $0x48] sm:$0xff]
    %v32 = vld [vmem:[%s4 + $0x50] sm:$0xff]
    %v33 = vld [vmem:[%s4 + $0x58] sm:$0xff]
    %v34 = vld [vmem:[%s4 + $0x60] sm:$0xff]
    %v35 = vld [vmem:[%s4 + $0x68] sm:$0xff]
    %v36 = vld [vmem:[%s4 + $0x70] sm:$0xff]
    %v37 = vld [vmem:[%s4 + $0x78] sm:$0xff]
    %v38 = vld [vmem:[%s1] sm:$0xff]
    %v39 = vld [vmem:[%s1 + $0x8] sm:$0xff]
    %v40 = vld [vmem:[%s1 + $0x10] sm:$0xff]
    %v41 = vld [vmem:[%s1 + $0x18] sm:$0xff]
    %v42 = vld [vmem:[%s1 + $0x20] sm:$0xff]
    %v43 = vld [vmem:[%s1 + $0x28] sm:$0xff]
    %v44 = vld [vmem:[%s1 + $0x30] sm:$0xff]
    %v45 = vld [vmem:[%s1 + $0x38] sm:$0xff]
    %v46 = vld [vmem:[%s1 + $0x40] sm:$0xff]
    %v47 = vld [vmem:[%s1 + $0x48] sm:$0xff]
    %v48 = vld [vmem:[%s1 + $0x50] sm:$0xff]
    %v49 = vld [vmem:[%s1 + $0x58] sm:$0xff]
    %v50 = vld [vmem:[%s1 + $0x60] sm:$0xff]
    %v51 = vld [vmem:[%s1 + $0x68] sm:$0xff]
    %v52 = vld [vmem:[%s1 + $0x70] sm:$0xff]
    %v53 = vld [vmem:[%s1 + $0x78] sm:$0xff]
    %55 = vset.pattern.permute.xlu0 0
    %56 = vperm.xlu0 %55, %v22
    %v57 = vpop.permute.xlu0 %56
    %60 = vset.pattern.permute.xlu0 0
    %61 = vperm.xlu0 %60, %v23
    %v62 = vpop.permute.xlu0 %61
    %65 = vset.pattern.permute.xlu0 0
    %66 = vperm.xlu0 %65, %v24
    %v67 = vpop.permute.xlu0 %66
    %70 = vset.pattern.permute.xlu0 0
    %71 = vperm.xlu0 %70, %v25
    %v72 = vpop.permute.xlu0 %71
    %75 = vset.pattern.permute.xlu0 0
    %76 = vperm.xlu0 %75, %v26
    %v77 = vpop.permute.xlu0 %76
    %80 = vset.pattern.permute.xlu0 0
    %81 = vperm.xlu0 %80, %v27
    %v82 = vpop.permute.xlu0 %81
    %85 = vset.pattern.permute.xlu0 0
    %86 = vperm.xlu0 %85, %v28
    %v87 = vpop.permute.xlu0 %86
    %90 = vset.pattern.permute.xlu0 0
    %91 = vperm.xlu0 %90, %v29
    %v92 = vpop.permute.xlu0 %91
    %95 = vset.pattern.permute.xlu0 0
    %96 = vperm.xlu0 %95, %v30
    %v97 = vpop.permute.xlu0 %96
    %100 = vset.pattern.permute.xlu0 0
    %101 = vperm.xlu0 %100, %v31
    %v102 = vpop.permute.xlu0 %101
    %105 = vset.pattern.permute.xlu0 0
    %106 = vperm.xlu0 %105, %v32
    %v107 = vpop.permute.xlu0 %106
    %110 = vset.pattern.permute.xlu0 0
    %111 = vperm.xlu0 %110, %v33
    %v112 = vpop.permute.xlu0 %111
    %115 = vset.pattern.permute.xlu0 0
    %116 = vperm.xlu0 %115, %v34
    %v117 = vpop.permute.xlu0 %116
    %120 = vset.pattern.permute.xlu0 0
    %121 = vperm.xlu0 %120, %v35
    %v122 = vpop.permute.xlu0 %121
    %125 = vset.pattern.permute.xlu0 0
    %126 = vperm.xlu0 %125, %v36
    %v127 = vpop.permute.xlu0 %126
    %130 = vset.pattern.permute.xlu0 0
    %131 = vperm.xlu0 %130, %v37
    %v132 = vpop.permute.xlu0 %131
    %vm134 = vcmask 31744
    %v136 = vsel %vm134, %v38, 0
    %v139 = vsel %vm134, %v39, 0
    %v142 = vsel %vm134, %v40, 0
    %v145 = vsel %vm134, %v41, 0
    %v148 = vsel %vm134, %v42, 0
    %v151 = vsel %vm134, %v43, 0
    %v154 = vsel %vm134, %v44, 0
    %v157 = vsel %vm134, %v45, 0
    %v160 = vsel %vm134, %v46, 0
    %v163 = vsel %vm134, %v47, 0
    %v166 = vsel %vm134, %v48, 0
    %v169 = vsel %vm134, %v49, 0
    %v172 = vsel %vm134, %v50, 0
    %v175 = vsel %vm134, %v51, 0
    %v178 = vsel %vm134, %v52, 0
    %v181 = vsel %vm134, %v53, 0
    %vm183 = vcmask 1043456
    %v185 = vsel %vm183, %v21, 0
    %187 = vmatpush.msra.mxu0 0.0
    %188 = vmatpush.msra.mxu0 0.0
    %189 = vmatpush.msra.mxu0 0.0
    %190 = vmatpush.msra.mxu0 0.0
    %191 = vmatpush.msra.mxu0 0.0
    %192 = vmatpush.msra.mxu0 0.0
    %193 = vmatpush.msra.mxu0 0.0
    %194 = vmatpush.msra.mxu0 0.0
    %195 = vmatpush.msra.mxu0 0.0
    %196 = vmatpush.msra.mxu0 0.0
    %197 = vmatpush.msra.mxu0 0.0
    %198 = vmatpush.msra.mxu0 0.0
    %199 = vmatpush.msra.mxu0 0.0
    %200 = vmatpush.msra.mxu0 0.0
    %201 = vmatpush.msra.mxu0 0.0
    %v202 = vand.u32 %v185, 4294901760
    %203 = vmatpush.msra.mxu0 %v202
    %v204 = vand.u32 %v136, 4294901760
    %v205 = vsub.f32 %v136, %v204
    %v206 = vand.u32 %v205, 4294901760
    %v207 = vsub.f32 %v205, %v206
    %v208 = vand.u32 %v207, 4294901760
    %209 = vmatmul.f32.gmra.mxu0 %v208
    %v210 = vpop.f32.mrf.mxu0
    %v211 = vadd.f32 %v57, %v210
    %v212 = vand.u32 %v139, 4294901760
    %v213 = vsub.f32 %v139, %v212
    %v214 = vand.u32 %v213, 4294901760
    %v215 = vsub.f32 %v213, %v214
    %v216 = vand.u32 %v215, 4294901760
    %217 = vmatmul.f32.gmra.mxu0 %v216
    %v218 = vpop.f32.mrf.mxu0
    %v219 = vadd.f32 %v62, %v218
    %v220 = vand.u32 %v142, 4294901760
    %v221 = vsub.f32 %v142, %v220
    %v222 = vand.u32 %v221, 4294901760
    %v223 = vsub.f32 %v221, %v222
    %v224 = vand.u32 %v223, 4294901760
    %225 = vmatmul.f32.gmra.mxu0 %v224
    %v226 = vpop.f32.mrf.mxu0
    %v227 = vadd.f32 %v67, %v226
    %v228 = vand.u32 %v145, 4294901760
    %v229 = vsub.f32 %v145, %v228
    %v230 = vand.u32 %v229, 4294901760
    %v231 = vsub.f32 %v229, %v230
    %v232 = vand.u32 %v231, 4294901760
    %233 = vmatmul.f32.gmra.mxu0 %v232
    %v234 = vpop.f32.mrf.mxu0
    %v235 = vadd.f32 %v72, %v234
    %v236 = vand.u32 %v148, 4294901760
    %v237 = vsub.f32 %v148, %v236
    %v238 = vand.u32 %v237, 4294901760
    %v239 = vsub.f32 %v237, %v238
    %v240 = vand.u32 %v239, 4294901760
    %241 = vmatmul.f32.gmra.mxu0 %v240
    %v242 = vpop.f32.mrf.mxu0
    %v243 = vadd.f32 %v77, %v242
    %v244 = vand.u32 %v151, 4294901760
    %v245 = vsub.f32 %v151, %v244
    %v246 = vand.u32 %v245, 4294901760
    %v247 = vsub.f32 %v245, %v246
    %v248 = vand.u32 %v247, 4294901760
    %249 = vmatmul.f32.gmra.mxu0 %v248
    %v250 = vpop.f32.mrf.mxu0
    %v251 = vadd.f32 %v82, %v250
    %v252 = vand.u32 %v154, 4294901760
    %v253 = vsub.f32 %v154, %v252
    %v254 = vand.u32 %v253, 4294901760
    %v255 = vsub.f32 %v253, %v254
    %v256 = vand.u32 %v255, 4294901760
    %257 = vmatmul.f32.gmra.mxu0 %v256
    %v258 = vpop.f32.mrf.mxu0
    %v259 = vadd.f32 %v87, %v258
    %v260 = vand.u32 %v157, 4294901760
    %v261 = vsub.f32 %v157, %v260
    %v262 = vand.u32 %v261, 4294901760
    %v263 = vsub.f32 %v261, %v262
    %v264 = vand.u32 %v263, 4294901760
    %265 = vmatmul.f32.gmra.mxu0 %v264
    %v266 = vpop.f32.mrf.mxu0
    %v267 = vadd.f32 %v92, %v266
    %v268 = vand.u32 %v160, 4294901760
    %v269 = vsub.f32 %v160, %v268
    %v270 = vand.u32 %v269, 4294901760
    %v271 = vsub.f32 %v269, %v270
    %v272 = vand.u32 %v271, 4294901760
    %273 = vmatmul.f32.gmra.mxu0 %v272
    %v274 = vpop.f32.mrf.mxu0
    %v275 = vadd.f32 %v97, %v274
    %v276 = vand.u32 %v163, 4294901760
    %v277 = vsub.f32 %v163, %v276
    %v278 = vand.u32 %v277, 4294901760
    %v279 = vsub.f32 %v277, %v278
    %v280 = vand.u32 %v279, 4294901760
    %281 = vmatmul.f32.gmra.mxu0 %v280
    %v282 = vpop.f32.mrf.mxu0
    %v283 = vadd.f32 %v102, %v282
    %v284 = vand.u32 %v166, 4294901760
    %v285 = vsub.f32 %v166, %v284
    %v286 = vand.u32 %v285, 4294901760
    %v287 = vsub.f32 %v285, %v286
    %v288 = vand.u32 %v287, 4294901760
    %289 = vmatmul.f32.gmra.mxu0 %v288
    %v290 = vpop.f32.mrf.mxu0
    %v291 = vadd.f32 %v107, %v290
    %v292 = vand.u32 %v169, 4294901760
    %v293 = vsub.f32 %v169, %v292
    %v294 = vand.u32 %v293, 4294901760
    %v295 = vsub.f32 %v293, %v294
    %v296 = vand.u32 %v295, 4294901760
    %297 = vmatmul.f32.gmra.mxu0 %v296
    %v298 = vpop.f32.mrf.mxu0
    %v299 = vadd.f32 %v112, %v298
    %v300 = vand.u32 %v172, 4294901760
    %v301 = vsub.f32 %v172, %v300
    %v302 = vand.u32 %v301, 4294901760
    %v303 = vsub.f32 %v301, %v302
    %v304 = vand.u32 %v303, 4294901760
    %305 = vmatmul.f32.gmra.mxu0 %v304
    %v306 = vpop.f32.mrf.mxu0
    %v307 = vadd.f32 %v117, %v306
    %v308 = vand.u32 %v175, 4294901760
    %v309 = vsub.f32 %v175, %v308
    %v310 = vand.u32 %v309, 4294901760
    %v311 = vsub.f32 %v309, %v310
    %v312 = vand.u32 %v311, 4294901760
    %313 = vmatmul.f32.gmra.mxu0 %v312
    %v314 = vpop.f32.mrf.mxu0
    %v315 = vadd.f32 %v122, %v314
    %v316 = vand.u32 %v178, 4294901760
    %v317 = vsub.f32 %v178, %v316
    %v318 = vand.u32 %v317, 4294901760
    %v319 = vsub.f32 %v317, %v318
    %v320 = vand.u32 %v319, 4294901760
    %321 = vmatmul.f32.gmra.mxu0 %v320
    %v322 = vpop.f32.mrf.mxu0
    %v323 = vadd.f32 %v127, %v322
    %v324 = vand.u32 %v181, 4294901760
    %v325 = vsub.f32 %v181, %v324
    %v326 = vand.u32 %v325, 4294901760
    %v327 = vsub.f32 %v325, %v326
    %v328 = vand.u32 %v327, 4294901760
    %329 = vmatmul.f32.gmra.mxu0 %v328
    %v330 = vpop.f32.mrf.mxu0
    %v331 = vadd.f32 %v132, %v330
    %332 = vdwg.mxu0
    %333 = vmatpush.msra.mxu0 0.0
    %334 = vmatpush.msra.mxu0 0.0
    %335 = vmatpush.msra.mxu0 0.0
    %336 = vmatpush.msra.mxu0 0.0
    %337 = vmatpush.msra.mxu0 0.0
    %338 = vmatpush.msra.mxu0 0.0
    %339 = vmatpush.msra.mxu0 0.0
    %340 = vmatpush.msra.mxu0 0.0
    %341 = vmatpush.msra.mxu0 0.0
    %342 = vmatpush.msra.mxu0 0.0
    %343 = vmatpush.msra.mxu0 0.0
    %344 = vmatpush.msra.mxu0 0.0
    %345 = vmatpush.msra.mxu0 0.0
    %346 = vmatpush.msra.mxu0 0.0
    %347 = vmatpush.msra.mxu0 0.0
    %v348 = vand.u32 %v185, 4294901760
    %v349 = vsub.f32 %v185, %v348
    %v350 = vand.u32 %v349, 4294901760
    %v351 = vsub.f32 %v349, %v350
    %v352 = vand.u32 %v351, 4294901760
    %353 = vmatpush.msra.mxu0 %v352
    %v354 = vand.u32 %v136, 4294901760
    %355 = vmatmul.f32.gmra.mxu0 %v354
    %v356 = vpop.f32.mrf.mxu0
    %v357 = vadd.f32 %v211, %v356
    %v358 = vand.u32 %v139, 4294901760
    %359 = vmatmul.f32.gmra.mxu0 %v358
    %v360 = vpop.f32.mrf.mxu0
    %v361 = vadd.f32 %v219, %v360
    %v362 = vand.u32 %v142, 4294901760
    %363 = vmatmul.f32.gmra.mxu0 %v362
    %v364 = vpop.f32.mrf.mxu0
    %v365 = vadd.f32 %v227, %v364
    %v366 = vand.u32 %v145, 4294901760
    %367 = vmatmul.f32.gmra.mxu0 %v366
    %v368 = vpop.f32.mrf.mxu0
    %v369 = vadd.f32 %v235, %v368
    %v370 = vand.u32 %v148, 4294901760
    %371 = vmatmul.f32.gmra.mxu0 %v370
    %v372 = vpop.f32.mrf.mxu0
    %v373 = vadd.f32 %v243, %v372
    %v374 = vand.u32 %v151, 4294901760
    %375 = vmatmul.f32.gmra.mxu0 %v374
    %v376 = vpop.f32.mrf.mxu0
    %v377 = vadd.f32 %v251, %v376
    %v378 = vand.u32 %v154, 4294901760
    %379 = vmatmul.f32.gmra.mxu0 %v378
    %v380 = vpop.f32.mrf.mxu0
    %v381 = vadd.f32 %v259, %v380
    %v382 = vand.u32 %v157, 4294901760
    %383 = vmatmul.f32.gmra.mxu0 %v382
    %v384 = vpop.f32.mrf.mxu0
    %v385 = vadd.f32 %v267, %v384
    %v386 = vand.u32 %v160, 4294901760
    %387 = vmatmul.f32.gmra.mxu0 %v386
    %v388 = vpop.f32.mrf.mxu0
    %v389 = vadd.f32 %v275, %v388
    %v390 = vand.u32 %v163, 4294901760
    %391 = vmatmul.f32.gmra.mxu0 %v390
    %v392 = vpop.f32.mrf.mxu0
    %v393 = vadd.f32 %v283, %v392
    %v394 = vand.u32 %v166, 4294901760
    %395 = vmatmul.f32.gmra.mxu0 %v394
    %v396 = vpop.f32.mrf.mxu0
    %v397 = vadd.f32 %v291, %v396
    %v398 = vand.u32 %v169, 4294901760
    %399 = vmatmul.f32.gmra.mxu0 %v398
    %v400 = vpop.f32.mrf.mxu0
    %v401 = vadd.f32 %v299, %v400
    %v402 = vand.u32 %v172, 4294901760
    %403 = vmatmul.f32.gmra.mxu0 %v402
    %v404 = vpop.f32.mrf.mxu0
    %v405 = vadd.f32 %v307, %v404
    %v406 = vand.u32 %v175, 4294901760
    %407 = vmatmul.f32.gmra.mxu0 %v406
    %v408 = vpop.f32.mrf.mxu0
    %v409 = vadd.f32 %v315, %v408
    %v410 = vand.u32 %v178, 4294901760
    %411 = vmatmul.f32.gmra.mxu0 %v410
    %v412 = vpop.f32.mrf.mxu0
    %v413 = vadd.f32 %v323, %v412
    %v414 = vand.u32 %v181, 4294901760
    %415 = vmatmul.f32.gmra.mxu0 %v414
    %v416 = vpop.f32.mrf.mxu0
    %v417 = vadd.f32 %v331, %v416
    %418 = vdwg.mxu0
    %419 = vmatpush.msra.mxu0 0.0
    %420 = vmatpush.msra.mxu0 0.0
    %421 = vmatpush.msra.mxu0 0.0
    %422 = vmatpush.msra.mxu0 0.0
    %423 = vmatpush.msra.mxu0 0.0
    %424 = vmatpush.msra.mxu0 0.0
    %425 = vmatpush.msra.mxu0 0.0
    %426 = vmatpush.msra.mxu0 0.0
    %427 = vmatpush.msra.mxu0 0.0
    %428 = vmatpush.msra.mxu0 0.0
    %429 = vmatpush.msra.mxu0 0.0
    %430 = vmatpush.msra.mxu0 0.0
    %431 = vmatpush.msra.mxu0 0.0
    %432 = vmatpush.msra.mxu0 0.0
    %433 = vmatpush.msra.mxu0 0.0
    %v434 = vand.u32 %v185, 4294901760
    %v435 = vsub.f32 %v185, %v434
    %436 = vmatpush.msra.mxu0 %v435
    %v437 = vand.u32 %v136, 4294901760
    %v438 = vsub.f32 %v136, %v437
    %439 = vmatmul.f32.gmra.mxu0 %v438
    %v440 = vpop.f32.mrf.mxu0
    %v441 = vadd.f32 %v357, %v440
    %v442 = vand.u32 %v139, 4294901760
    %v443 = vsub.f32 %v139, %v442
    %444 = vmatmul.f32.gmra.mxu0 %v443
    %v445 = vpop.f32.mrf.mxu0
    %v446 = vadd.f32 %v361, %v445
    %v447 = vand.u32 %v142, 4294901760
    %v448 = vsub.f32 %v142, %v447
    %449 = vmatmul.f32.gmra.mxu0 %v448
    %v450 = vpop.f32.mrf.mxu0
    %v451 = vadd.f32 %v365, %v450
    %v452 = vand.u32 %v145, 4294901760
    %v453 = vsub.f32 %v145, %v452
    %454 = vmatmul.f32.gmra.mxu0 %v453
    %v455 = vpop.f32.mrf.mxu0
    %v456 = vadd.f32 %v369, %v455
    %v457 = vand.u32 %v148, 4294901760
    %v458 = vsub.f32 %v148, %v457
    %459 = vmatmul.f32.gmra.mxu0 %v458
    %v460 = vpop.f32.mrf.mxu0
    %v461 = vadd.f32 %v373, %v460
    %v462 = vand.u32 %v151, 4294901760
    %v463 = vsub.f32 %v151, %v462
    %464 = vmatmul.f32.gmra.mxu0 %v463
    %v465 = vpop.f32.mrf.mxu0
    %v466 = vadd.f32 %v377, %v465
    %v467 = vand.u32 %v154, 4294901760
    %v468 = vsub.f32 %v154, %v467
    %469 = vmatmul.f32.gmra.mxu0 %v468
    %v470 = vpop.f32.mrf.mxu0
    %v471 = vadd.f32 %v381, %v470
    %v472 = vand.u32 %v157, 4294901760
    %v473 = vsub.f32 %v157, %v472
    %474 = vmatmul.f32.gmra.mxu0 %v473
    %v475 = vpop.f32.mrf.mxu0
    %v476 = vadd.f32 %v385, %v475
    %v477 = vand.u32 %v160, 4294901760
    %v478 = vsub.f32 %v160, %v477
    %479 = vmatmul.f32.gmra.mxu0 %v478
    %v480 = vpop.f32.mrf.mxu0
    %v481 = vadd.f32 %v389, %v480
    %v482 = vand.u32 %v163, 4294901760
    %v483 = vsub.f32 %v163, %v482
    %484 = vmatmul.f32.gmra.mxu0 %v483
    %v485 = vpop.f32.mrf.mxu0
    %v486 = vadd.f32 %v393, %v485
    %v487 = vand.u32 %v166, 4294901760
    %v488 = vsub.f32 %v166, %v487
    %489 = vmatmul.f32.gmra.mxu0 %v488
    %v490 = vpop.f32.mrf.mxu0
    %v491 = vadd.f32 %v397, %v490
    %v492 = vand.u32 %v169, 4294901760
    %v493 = vsub.f32 %v169, %v492
    %494 = vmatmul.f32.gmra.mxu0 %v493
    %v495 = vpop.f32.mrf.mxu0
    %v496 = vadd.f32 %v401, %v495
    %v497 = vand.u32 %v172, 4294901760
    %v498 = vsub.f32 %v172, %v497
    %499 = vmatmul.f32.gmra.mxu0 %v498
    %v500 = vpop.f32.mrf.mxu0
    %v501 = vadd.f32 %v405, %v500
    %v502 = vand.u32 %v175, 4294901760
    %v503 = vsub.f32 %v175, %v502
    %504 = vmatmul.f32.gmra.mxu0 %v503
    %v505 = vpop.f32.mrf.mxu0
    %v506 = vadd.f32 %v409, %v505
    %v507 = vand.u32 %v178, 4294901760
    %v508 = vsub.f32 %v178, %v507
    %509 = vmatmul.f32.gmra.mxu0 %v508
    %v510 = vpop.f32.mrf.mxu0
    %v511 = vadd.f32 %v413, %v510
    %v512 = vand.u32 %v181, 4294901760
    %v513 = vsub.f32 %v181, %v512
    %514 = vmatmul.f32.gmra.mxu0 %v513
    %v515 = vpop.f32.mrf.mxu0
    %v516 = vadd.f32 %v417, %v515
    %517 = vdwg.mxu0
    %518 = vmatpush.msra.mxu0 0.0
    %519 = vmatpush.msra.mxu0 0.0
    %520 = vmatpush.msra.mxu0 0.0
    %521 = vmatpush.msra.mxu0 0.0
    %522 = vmatpush.msra.mxu0 0.0
    %523 = vmatpush.msra.mxu0 0.0
    %524 = vmatpush.msra.mxu0 0.0
    %525 = vmatpush.msra.mxu0 0.0
    %526 = vmatpush.msra.mxu0 0.0
    %527 = vmatpush.msra.mxu0 0.0
    %528 = vmatpush.msra.mxu0 0.0
    %529 = vmatpush.msra.mxu0 0.0
    %530 = vmatpush.msra.mxu0 0.0
    %531 = vmatpush.msra.mxu0 0.0
    %532 = vmatpush.msra.mxu0 0.0
    %v533 = vand.u32 %v185, 4294901760
    %534 = vmatpush.msra.mxu0 %v533
    %v535 = vand.u32 %v136, 4294901760
    %v536 = vsub.f32 %v136, %v535
    %v537 = vand.u32 %v536, 4294901760
    %538 = vmatmul.f32.gmra.mxu0 %v537
    %v539 = vpop.f32.mrf.mxu0
    %v540 = vadd.f32 %v441, %v539
    %v541 = vand.u32 %v139, 4294901760
    %v542 = vsub.f32 %v139, %v541
    %v543 = vand.u32 %v542, 4294901760
    %544 = vmatmul.f32.gmra.mxu0 %v543
    %v545 = vpop.f32.mrf.mxu0
    %v546 = vadd.f32 %v446, %v545
    %v547 = vand.u32 %v142, 4294901760
    %v548 = vsub.f32 %v142, %v547
    %v549 = vand.u32 %v548, 4294901760
    %550 = vmatmul.f32.gmra.mxu0 %v549
    %v551 = vpop.f32.mrf.mxu0
    %v552 = vadd.f32 %v451, %v551
    %v553 = vand.u32 %v145, 4294901760
    %v554 = vsub.f32 %v145, %v553
    %v555 = vand.u32 %v554, 4294901760
    %556 = vmatmul.f32.gmra.mxu0 %v555
    %v557 = vpop.f32.mrf.mxu0
    %v558 = vadd.f32 %v456, %v557
    %v559 = vand.u32 %v148, 4294901760
    %v560 = vsub.f32 %v148, %v559
    %v561 = vand.u32 %v560, 4294901760
    %562 = vmatmul.f32.gmra.mxu0 %v561
    %v563 = vpop.f32.mrf.mxu0
    %v564 = vadd.f32 %v461, %v563
    %v565 = vand.u32 %v151, 4294901760
    %v566 = vsub.f32 %v151, %v565
    %v567 = vand.u32 %v566, 4294901760
    %568 = vmatmul.f32.gmra.mxu0 %v567
    %v569 = vpop.f32.mrf.mxu0
    %v570 = vadd.f32 %v466, %v569
    %v571 = vand.u32 %v154, 4294901760
    %v572 = vsub.f32 %v154, %v571
    %v573 = vand.u32 %v572, 4294901760
    %574 = vmatmul.f32.gmra.mxu0 %v573
    %v575 = vpop.f32.mrf.mxu0
    %v576 = vadd.f32 %v471, %v575
    %v577 = vand.u32 %v157, 4294901760
    %v578 = vsub.f32 %v157, %v577
    %v579 = vand.u32 %v578, 4294901760
    %580 = vmatmul.f32.gmra.mxu0 %v579
    %v581 = vpop.f32.mrf.mxu0
    %v582 = vadd.f32 %v476, %v581
    %v583 = vand.u32 %v160, 4294901760
    %v584 = vsub.f32 %v160, %v583
    %v585 = vand.u32 %v584, 4294901760
    %586 = vmatmul.f32.gmra.mxu0 %v585
    %v587 = vpop.f32.mrf.mxu0
    %v588 = vadd.f32 %v481, %v587
    %v589 = vand.u32 %v163, 4294901760
    %v590 = vsub.f32 %v163, %v589
    %v591 = vand.u32 %v590, 4294901760
    %592 = vmatmul.f32.gmra.mxu0 %v591
    %v593 = vpop.f32.mrf.mxu0
    %v594 = vadd.f32 %v486, %v593
    %v595 = vand.u32 %v166, 4294901760
    %v596 = vsub.f32 %v166, %v595
    %v597 = vand.u32 %v596, 4294901760
    %598 = vmatmul.f32.gmra.mxu0 %v597
    %v599 = vpop.f32.mrf.mxu0
    %v600 = vadd.f32 %v491, %v599
    %v601 = vand.u32 %v169, 4294901760
    %v602 = vsub.f32 %v169, %v601
    %v603 = vand.u32 %v602, 4294901760
    %604 = vmatmul.f32.gmra.mxu0 %v603
    %v605 = vpop.f32.mrf.mxu0
    %v606 = vadd.f32 %v496, %v605
    %v607 = vand.u32 %v172, 4294901760
    %v608 = vsub.f32 %v172, %v607
    %v609 = vand.u32 %v608, 4294901760
    %610 = vmatmul.f32.gmra.mxu0 %v609
    %v611 = vpop.f32.mrf.mxu0
    %v612 = vadd.f32 %v501, %v611
    %v613 = vand.u32 %v175, 4294901760
    %v614 = vsub.f32 %v175, %v613
    %v615 = vand.u32 %v614, 4294901760
    %616 = vmatmul.f32.gmra.mxu0 %v615
    %v617 = vpop.f32.mrf.mxu0
    %v618 = vadd.f32 %v506, %v617
    %v619 = vand.u32 %v178, 4294901760
    %v620 = vsub.f32 %v178, %v619
    %v621 = vand.u32 %v620, 4294901760
    %622 = vmatmul.f32.gmra.mxu0 %v621
    %v623 = vpop.f32.mrf.mxu0
    %v624 = vadd.f32 %v511, %v623
    %v625 = vand.u32 %v181, 4294901760
    %v626 = vsub.f32 %v181, %v625
    %v627 = vand.u32 %v626, 4294901760
    %628 = vmatmul.f32.gmra.mxu0 %v627
    %v629 = vpop.f32.mrf.mxu0
    %v630 = vadd.f32 %v516, %v629
    %631 = vdwg.mxu0
    %632 = vmatpush.msra.mxu0 0.0
    %633 = vmatpush.msra.mxu0 0.0
    %634 = vmatpush.msra.mxu0 0.0
    %635 = vmatpush.msra.mxu0 0.0
    %636 = vmatpush.msra.mxu0 0.0
    %637 = vmatpush.msra.mxu0 0.0
    %638 = vmatpush.msra.mxu0 0.0
    %639 = vmatpush.msra.mxu0 0.0
    %640 = vmatpush.msra.mxu0 0.0
    %641 = vmatpush.msra.mxu0 0.0
    %642 = vmatpush.msra.mxu0 0.0
    %643 = vmatpush.msra.mxu0 0.0
    %644 = vmatpush.msra.mxu0 0.0
    %645 = vmatpush.msra.mxu0 0.0
    %646 = vmatpush.msra.mxu0 0.0
    %v647 = vand.u32 %v185, 4294901760
    %v648 = vsub.f32 %v185, %v647
    %v649 = vand.u32 %v648, 4294901760
    %650 = vmatpush.msra.mxu0 %v649
    %v651 = vand.u32 %v136, 4294901760
    %652 = vmatmul.f32.gmra.mxu0 %v651
    %v653 = vpop.f32.mrf.mxu0
    %v654 = vadd.f32 %v540, %v653
    %v655 = vand.u32 %v139, 4294901760
    %656 = vmatmul.f32.gmra.mxu0 %v655
    %v657 = vpop.f32.mrf.mxu0
    %v658 = vadd.f32 %v546, %v657
    %v659 = vand.u32 %v142, 4294901760
    %660 = vmatmul.f32.gmra.mxu0 %v659
    %v661 = vpop.f32.mrf.mxu0
    %v662 = vadd.f32 %v552, %v661
    %v663 = vand.u32 %v145, 4294901760
    %664 = vmatmul.f32.gmra.mxu0 %v663
    %v665 = vpop.f32.mrf.mxu0
    %v666 = vadd.f32 %v558, %v665
    %v667 = vand.u32 %v148, 4294901760
    %668 = vmatmul.f32.gmra.mxu0 %v667
    %v669 = vpop.f32.mrf.mxu0
    %v670 = vadd.f32 %v564, %v669
    %v671 = vand.u32 %v151, 4294901760
    %672 = vmatmul.f32.gmra.mxu0 %v671
    %v673 = vpop.f32.mrf.mxu0
    %v674 = vadd.f32 %v570, %v673
    %v675 = vand.u32 %v154, 4294901760
    %676 = vmatmul.f32.gmra.mxu0 %v675
    %v677 = vpop.f32.mrf.mxu0
    %v678 = vadd.f32 %v576, %v677
    %v679 = vand.u32 %v157, 4294901760
    %680 = vmatmul.f32.gmra.mxu0 %v679
    %v681 = vpop.f32.mrf.mxu0
    %v682 = vadd.f32 %v582, %v681
    %v683 = vand.u32 %v160, 4294901760
    %684 = vmatmul.f32.gmra.mxu0 %v683
    %v685 = vpop.f32.mrf.mxu0
    %v686 = vadd.f32 %v588, %v685
    %v687 = vand.u32 %v163, 4294901760
    %688 = vmatmul.f32.gmra.mxu0 %v687
    %v689 = vpop.f32.mrf.mxu0
    %v690 = vadd.f32 %v594, %v689
    %v691 = vand.u32 %v166, 4294901760
    %692 = vmatmul.f32.gmra.mxu0 %v691
    %v693 = vpop.f32.mrf.mxu0
    %v694 = vadd.f32 %v600, %v693
    %v695 = vand.u32 %v169, 4294901760
    %696 = vmatmul.f32.gmra.mxu0 %v695
    %v697 = vpop.f32.mrf.mxu0
    %v698 = vadd.f32 %v606, %v697
    %v699 = vand.u32 %v172, 4294901760
    %700 = vmatmul.f32.gmra.mxu0 %v699
    %v701 = vpop.f32.mrf.mxu0
    %v702 = vadd.f32 %v612, %v701
    %v703 = vand.u32 %v175, 4294901760
    %704 = vmatmul.f32.gmra.mxu0 %v703
    %v705 = vpop.f32.mrf.mxu0
    %v706 = vadd.f32 %v618, %v705
    %v707 = vand.u32 %v178, 4294901760
    %708 = vmatmul.f32.gmra.mxu0 %v707
    %v709 = vpop.f32.mrf.mxu0
    %v710 = vadd.f32 %v624, %v709
    %v711 = vand.u32 %v181, 4294901760
    %712 = vmatmul.f32.gmra.mxu0 %v711
    %v713 = vpop.f32.mrf.mxu0
    %v714 = vadd.f32 %v630, %v713
    %715 = vdwg.mxu0
    %716 = vmatpush.msra.mxu0 0.0
    %717 = vmatpush.msra.mxu0 0.0
    %718 = vmatpush.msra.mxu0 0.0
    %719 = vmatpush.msra.mxu0 0.0
    %720 = vmatpush.msra.mxu0 0.0
    %721 = vmatpush.msra.mxu0 0.0
    %722 = vmatpush.msra.mxu0 0.0
    %723 = vmatpush.msra.mxu0 0.0
    %724 = vmatpush.msra.mxu0 0.0
    %725 = vmatpush.msra.mxu0 0.0
    %726 = vmatpush.msra.mxu0 0.0
    %727 = vmatpush.msra.mxu0 0.0
    %728 = vmatpush.msra.mxu0 0.0
    %729 = vmatpush.msra.mxu0 0.0
    %730 = vmatpush.msra.mxu0 0.0
    %v731 = vand.u32 %v185, 4294901760
    %732 = vmatpush.msra.mxu0 %v731
    %v733 = vand.u32 %v136, 4294901760
    %734 = vmatmul.f32.gmra.mxu0 %v733
    %v735 = vpop.f32.mrf.mxu0
    %v736 = vadd.f32 %v654, %v735
    %v737 = vand.u32 %v139, 4294901760
    %738 = vmatmul.f32.gmra.mxu0 %v737
    %v739 = vpop.f32.mrf.mxu0
    %v740 = vadd.f32 %v658, %v739
    %v741 = vand.u32 %v142, 4294901760
    %742 = vmatmul.f32.gmra.mxu0 %v741
    %v743 = vpop.f32.mrf.mxu0
    %v744 = vadd.f32 %v662, %v743
    %v745 = vand.u32 %v145, 4294901760
    %746 = vmatmul.f32.gmra.mxu0 %v745
    %v747 = vpop.f32.mrf.mxu0
    %v748 = vadd.f32 %v666, %v747
    %v749 = vand.u32 %v148, 4294901760
    %750 = vmatmul.f32.gmra.mxu0 %v749
    %v751 = vpop.f32.mrf.mxu0
    %v752 = vadd.f32 %v670, %v751
    %v753 = vand.u32 %v151, 4294901760
    %754 = vmatmul.f32.gmra.mxu0 %v753
    %v755 = vpop.f32.mrf.mxu0
    %v756 = vadd.f32 %v674, %v755
    %v757 = vand.u32 %v154, 4294901760
    %758 = vmatmul.f32.gmra.mxu0 %v757
    %v759 = vpop.f32.mrf.mxu0
    %v760 = vadd.f32 %v678, %v759
    %v761 = vand.u32 %v157, 4294901760
    %762 = vmatmul.f32.gmra.mxu0 %v761
    %v763 = vpop.f32.mrf.mxu0
    %v764 = vadd.f32 %v682, %v763
    %v765 = vand.u32 %v160, 4294901760
    %766 = vmatmul.f32.gmra.mxu0 %v765
    %v767 = vpop.f32.mrf.mxu0
    %v768 = vadd.f32 %v686, %v767
    %v769 = vand.u32 %v163, 4294901760
    %770 = vmatmul.f32.gmra.mxu0 %v769
    %v771 = vpop.f32.mrf.mxu0
    %v772 = vadd.f32 %v690, %v771
    %v773 = vand.u32 %v166, 4294901760
    %774 = vmatmul.f32.gmra.mxu0 %v773
    %v775 = vpop.f32.mrf.mxu0
    %v776 = vadd.f32 %v694, %v775
    %v777 = vand.u32 %v169, 4294901760
    %778 = vmatmul.f32.gmra.mxu0 %v777
    %v779 = vpop.f32.mrf.mxu0
    %v780 = vadd.f32 %v698, %v779
    %v781 = vand.u32 %v172, 4294901760
    %782 = vmatmul.f32.gmra.mxu0 %v781
    %v783 = vpop.f32.mrf.mxu0
    %v784 = vadd.f32 %v702, %v783
    %v785 = vand.u32 %v175, 4294901760
    %786 = vmatmul.f32.gmra.mxu0 %v785
    %v787 = vpop.f32.mrf.mxu0
    %v788 = vadd.f32 %v706, %v787
    %v789 = vand.u32 %v178, 4294901760
    %790 = vmatmul.f32.gmra.mxu0 %v789
    %v791 = vpop.f32.mrf.mxu0
    %v792 = vadd.f32 %v710, %v791
    %v793 = vand.u32 %v181, 4294901760
    %794 = vmatmul.f32.gmra.mxu0 %v793
    %v795 = vpop.f32.mrf.mxu0
    %v796 = vadd.f32 %v714, %v795
    %797 = vdwg.mxu0
    %v798 = vmax.f32 %v736, 0.0
    %v799 = vmax.f32 %v740, 0.0
    %v800 = vmax.f32 %v744, 0.0
    %v801 = vmax.f32 %v748, 0.0
    %v802 = vmax.f32 %v752, 0.0
    %v803 = vmax.f32 %v756, 0.0
    %v804 = vmax.f32 %v760, 0.0
    %v805 = vmax.f32 %v764, 0.0
    %v806 = vmax.f32 %v768, 0.0
    %v807 = vmax.f32 %v772, 0.0
    %v808 = vmax.f32 %v776, 0.0
    %v809 = vmax.f32 %v780, 0.0
    %v810 = vmax.f32 %v784, 0.0
    %v811 = vmax.f32 %v788, 0.0
    %v812 = vmax.f32 %v792, 0.0
    %v813 = vmax.f32 %v796, 0.0
    %v814 = vld [vmem:[%s2] sm:$0xff]
    %v815 = vld [vmem:[%s2 + $0x8] sm:$0xff]
    %v816 = vld [vmem:[%s2 + $0x10] sm:$0xff]
    %v817 = vld [vmem:[%s2 + $0x18] sm:$0xff]
    %v818 = vld [vmem:[%s2 + $0x20] sm:$0xff]
    %v819 = vld [vmem:[%s2 + $0x28] sm:$0xff]
    %v820 = vld [vmem:[%s2 + $0x30] sm:$0xff]
    %v821 = vld [vmem:[%s2 + $0x38] sm:$0xff]
    %822 = vset.pattern.permute.xlu0 1
    %823 = vperm.xlu0 %822, %v22
    %v824 = vpop.permute.xlu0 %823
    %826 = vset.pattern.permute.xlu0 1
    %827 = vperm.xlu0 %826, %v23
    %v828 = vpop.permute.xlu0 %827
    %830 = vset.pattern.permute.xlu0 1
    %831 = vperm.xlu0 %830, %v24
    %v832 = vpop.permute.xlu0 %831
    %834 = vset.pattern.permute.xlu0 1
    %835 = vperm.xlu0 %834, %v25
    %v836 = vpop.permute.xlu0 %835
    %838 = vset.pattern.permute.xlu0 1
    %839 = vperm.xlu0 %838, %v26
    %v840 = vpop.permute.xlu0 %839
    %842 = vset.pattern.permute.xlu0 1
    %843 = vperm.xlu0 %842, %v27
    %v844 = vpop.permute.xlu0 %843
    %846 = vset.pattern.permute.xlu0 1
    %847 = vperm.xlu0 %846, %v28
    %v848 = vpop.permute.xlu0 %847
    %850 = vset.pattern.permute.xlu0 1
    %851 = vperm.xlu0 %850, %v29
    %v852 = vpop.permute.xlu0 %851
    %v854 = vand.u32 %v813, 4294901760
    %855 = vmatpush.msra.mxu0 %v854
    %v856 = vand.u32 %v812, 4294901760
    %857 = vmatpush.msra.mxu0 %v856
    %v858 = vand.u32 %v811, 4294901760
    %859 = vmatpush.msra.mxu0 %v858
    %v860 = vand.u32 %v810, 4294901760
    %861 = vmatpush.msra.mxu0 %v860
    %v862 = vand.u32 %v809, 4294901760
    %863 = vmatpush.msra.mxu0 %v862
    %v864 = vand.u32 %v808, 4294901760
    %865 = vmatpush.msra.mxu0 %v864
    %v866 = vand.u32 %v807, 4294901760
    %867 = vmatpush.msra.mxu0 %v866
    %v868 = vand.u32 %v806, 4294901760
    %869 = vmatpush.msra.mxu0 %v868
    %v870 = vand.u32 %v805, 4294901760
    %871 = vmatpush.msra.mxu0 %v870
    %v872 = vand.u32 %v804, 4294901760
    %873 = vmatpush.msra.mxu0 %v872
    %v874 = vand.u32 %v803, 4294901760
    %875 = vmatpush.msra.mxu0 %v874
    %v876 = vand.u32 %v802, 4294901760
    %877 = vmatpush.msra.mxu0 %v876
    %v878 = vand.u32 %v801, 4294901760
    %879 = vmatpush.msra.mxu0 %v878
    %v880 = vand.u32 %v800, 4294901760
    %881 = vmatpush.msra.mxu0 %v880
    %v882 = vand.u32 %v799, 4294901760
    %883 = vmatpush.msra.mxu0 %v882
    %v884 = vand.u32 %v798, 4294901760
    %885 = vmatpush.msra.mxu0 %v884
    %v886 = vand.u32 %v814, 4294901760
    %v887 = vsub.f32 %v814, %v886
    %v888 = vand.u32 %v887, 4294901760
    %v889 = vsub.f32 %v887, %v888
    %v890 = vand.u32 %v889, 4294901760
    %891 = vmatmul.f32.gmra.mxu0 %v890
    %v892 = vpop.f32.mrf.mxu0
    %v893 = vadd.f32 %v824, %v892
    %v894 = vand.u32 %v815, 4294901760
    %v895 = vsub.f32 %v815, %v894
    %v896 = vand.u32 %v895, 4294901760
    %v897 = vsub.f32 %v895, %v896
    %v898 = vand.u32 %v897, 4294901760
    %899 = vmatmul.f32.gmra.mxu0 %v898
    %v900 = vpop.f32.mrf.mxu0
    %v901 = vadd.f32 %v828, %v900
    %v902 = vand.u32 %v816, 4294901760
    %v903 = vsub.f32 %v816, %v902
    %v904 = vand.u32 %v903, 4294901760
    %v905 = vsub.f32 %v903, %v904
    %v906 = vand.u32 %v905, 4294901760
    %907 = vmatmul.f32.gmra.mxu0 %v906
    %v908 = vpop.f32.mrf.mxu0
    %v909 = vadd.f32 %v832, %v908
    %v910 = vand.u32 %v817, 4294901760
    %v911 = vsub.f32 %v817, %v910
    %v912 = vand.u32 %v911, 4294901760
    %v913 = vsub.f32 %v911, %v912
    %v914 = vand.u32 %v913, 4294901760
    %915 = vmatmul.f32.gmra.mxu0 %v914
    %v916 = vpop.f32.mrf.mxu0
    %v917 = vadd.f32 %v836, %v916
    %v918 = vand.u32 %v818, 4294901760
    %v919 = vsub.f32 %v818, %v918
    %v920 = vand.u32 %v919, 4294901760
    %v921 = vsub.f32 %v919, %v920
    %v922 = vand.u32 %v921, 4294901760
    %923 = vmatmul.f32.gmra.mxu0 %v922
    %v924 = vpop.f32.mrf.mxu0
    %v925 = vadd.f32 %v840, %v924
    %v926 = vand.u32 %v819, 4294901760
    %v927 = vsub.f32 %v819, %v926
    %v928 = vand.u32 %v927, 4294901760
    %v929 = vsub.f32 %v927, %v928
    %v930 = vand.u32 %v929, 4294901760
    %931 = vmatmul.f32.gmra.mxu0 %v930
    %v932 = vpop.f32.mrf.mxu0
    %v933 = vadd.f32 %v844, %v932
    %v934 = vand.u32 %v820, 4294901760
    %v935 = vsub.f32 %v820, %v934
    %v936 = vand.u32 %v935, 4294901760
    %v937 = vsub.f32 %v935, %v936
    %v938 = vand.u32 %v937, 4294901760
    %939 = vmatmul.f32.gmra.mxu0 %v938
    %v940 = vpop.f32.mrf.mxu0
    %v941 = vadd.f32 %v848, %v940
    %v942 = vand.u32 %v821, 4294901760
    %v943 = vsub.f32 %v821, %v942
    %v944 = vand.u32 %v943, 4294901760
    %v945 = vsub.f32 %v943, %v944
    %v946 = vand.u32 %v945, 4294901760
    %947 = vmatmul.f32.gmra.mxu0 %v946
    %v948 = vpop.f32.mrf.mxu0
    %v949 = vadd.f32 %v852, %v948
    %950 = vdwg.mxu0
    %v951 = vand.u32 %v813, 4294901760
    %v952 = vsub.f32 %v813, %v951
    %v953 = vand.u32 %v952, 4294901760
    %v954 = vsub.f32 %v952, %v953
    %v955 = vand.u32 %v954, 4294901760
    %956 = vmatpush.msra.mxu0 %v955
    %v957 = vand.u32 %v812, 4294901760
    %v958 = vsub.f32 %v812, %v957
    %v959 = vand.u32 %v958, 4294901760
    %v960 = vsub.f32 %v958, %v959
    %v961 = vand.u32 %v960, 4294901760
    %962 = vmatpush.msra.mxu0 %v961
    %v963 = vand.u32 %v811, 4294901760
    %v964 = vsub.f32 %v811, %v963
    %v965 = vand.u32 %v964, 4294901760
    %v966 = vsub.f32 %v964, %v965
    %v967 = vand.u32 %v966, 4294901760
    %968 = vmatpush.msra.mxu0 %v967
    %v969 = vand.u32 %v810, 4294901760
    %v970 = vsub.f32 %v810, %v969
    %v971 = vand.u32 %v970, 4294901760
    %v972 = vsub.f32 %v970, %v971
    %v973 = vand.u32 %v972, 4294901760
    %974 = vmatpush.msra.mxu0 %v973
    %v975 = vand.u32 %v809, 4294901760
    %v976 = vsub.f32 %v809, %v975
    %v977 = vand.u32 %v976, 4294901760
    %v978 = vsub.f32 %v976, %v977
    %v979 = vand.u32 %v978, 4294901760
    %980 = vmatpush.msra.mxu0 %v979
    %v981 = vand.u32 %v808, 4294901760
    %v982 = vsub.f32 %v808, %v981
    %v983 = vand.u32 %v982, 4294901760
    %v984 = vsub.f32 %v982, %v983
    %v985 = vand.u32 %v984, 4294901760
    %986 = vmatpush.msra.mxu0 %v985
    %v987 = vand.u32 %v807, 4294901760
    %v988 = vsub.f32 %v807, %v987
    %v989 = vand.u32 %v988, 4294901760
    %v990 = vsub.f32 %v988, %v989
    %v991 = vand.u32 %v990, 4294901760
    %992 = vmatpush.msra.mxu0 %v991
    %v993 = vand.u32 %v806, 4294901760
    %v994 = vsub.f32 %v806, %v993
    %v995 = vand.u32 %v994, 4294901760
    %v996 = vsub.f32 %v994, %v995
    %v997 = vand.u32 %v996, 4294901760
    %998 = vmatpush.msra.mxu0 %v997
    %v999 = vand.u32 %v805, 4294901760
    %v1000 = vsub.f32 %v805, %v999
    %v1001 = vand.u32 %v1000, 4294901760
    %v1002 = vsub.f32 %v1000, %v1001
    %v1003 = vand.u32 %v1002, 4294901760
    %1004 = vmatpush.msra.mxu0 %v1003
    %v1005 = vand.u32 %v804, 4294901760
    %v1006 = vsub.f32 %v804, %v1005
    %v1007 = vand.u32 %v1006, 4294901760
    %v1008 = vsub.f32 %v1006, %v1007
    %v1009 = vand.u32 %v1008, 4294901760
    %1010 = vmatpush.msra.mxu0 %v1009
    %v1011 = vand.u32 %v803, 4294901760
    %v1012 = vsub.f32 %v803, %v1011
    %v1013 = vand.u32 %v1012, 4294901760
    %v1014 = vsub.f32 %v1012, %v1013
    %v1015 = vand.u32 %v1014, 4294901760
    %1016 = vmatpush.msra.mxu0 %v1015
    %v1017 = vand.u32 %v802, 4294901760
    %v1018 = vsub.f32 %v802, %v1017
    %v1019 = vand.u32 %v1018, 4294901760
    %v1020 = vsub.f32 %v1018, %v1019
    %v1021 = vand.u32 %v1020, 4294901760
    %1022 = vmatpush.msra.mxu0 %v1021
    %v1023 = vand.u32 %v801, 4294901760
    %v1024 = vsub.f32 %v801, %v1023
    %v1025 = vand.u32 %v1024, 4294901760
    %v1026 = vsub.f32 %v1024, %v1025
    %v1027 = vand.u32 %v1026, 4294901760
    %1028 = vmatpush.msra.mxu0 %v1027
    %v1029 = vand.u32 %v800, 4294901760
    %v1030 = vsub.f32 %v800, %v1029
    %v1031 = vand.u32 %v1030, 4294901760
    %v1032 = vsub.f32 %v1030, %v1031
    %v1033 = vand.u32 %v1032, 4294901760
    %1034 = vmatpush.msra.mxu0 %v1033
    %v1035 = vand.u32 %v799, 4294901760
    %v1036 = vsub.f32 %v799, %v1035
    %v1037 = vand.u32 %v1036, 4294901760
    %v1038 = vsub.f32 %v1036, %v1037
    %v1039 = vand.u32 %v1038, 4294901760
    %1040 = vmatpush.msra.mxu0 %v1039
    %v1041 = vand.u32 %v798, 4294901760
    %v1042 = vsub.f32 %v798, %v1041
    %v1043 = vand.u32 %v1042, 4294901760
    %v1044 = vsub.f32 %v1042, %v1043
    %v1045 = vand.u32 %v1044, 4294901760
    %1046 = vmatpush.msra.mxu0 %v1045
    %v1047 = vand.u32 %v814, 4294901760
    %1048 = vmatmul.f32.gmra.mxu0 %v1047
    %v1049 = vpop.f32.mrf.mxu0
    %v1050 = vadd.f32 %v893, %v1049
    %v1051 = vand.u32 %v815, 4294901760
    %1052 = vmatmul.f32.gmra.mxu0 %v1051
    %v1053 = vpop.f32.mrf.mxu0
    %v1054 = vadd.f32 %v901, %v1053
    %v1055 = vand.u32 %v816, 4294901760
    %1056 = vmatmul.f32.gmra.mxu0 %v1055
    %v1057 = vpop.f32.mrf.mxu0
    %v1058 = vadd.f32 %v909, %v1057
    %v1059 = vand.u32 %v817, 4294901760
    %1060 = vmatmul.f32.gmra.mxu0 %v1059
    %v1061 = vpop.f32.mrf.mxu0
    %v1062 = vadd.f32 %v917, %v1061
    %v1063 = vand.u32 %v818, 4294901760
    %1064 = vmatmul.f32.gmra.mxu0 %v1063
    %v1065 = vpop.f32.mrf.mxu0
    %v1066 = vadd.f32 %v925, %v1065
    %v1067 = vand.u32 %v819, 4294901760
    %1068 = vmatmul.f32.gmra.mxu0 %v1067
    %v1069 = vpop.f32.mrf.mxu0
    %v1070 = vadd.f32 %v933, %v1069
    %v1071 = vand.u32 %v820, 4294901760
    %1072 = vmatmul.f32.gmra.mxu0 %v1071
    %v1073 = vpop.f32.mrf.mxu0
    %v1074 = vadd.f32 %v941, %v1073
    %v1075 = vand.u32 %v821, 4294901760
    %1076 = vmatmul.f32.gmra.mxu0 %v1075
    %v1077 = vpop.f32.mrf.mxu0
    %v1078 = vadd.f32 %v949, %v1077
    %1079 = vdwg.mxu0
    %v1080 = vand.u32 %v813, 4294901760
    %v1081 = vsub.f32 %v813, %v1080
    %1082 = vmatpush.msra.mxu0 %v1081
    %v1083 = vand.u32 %v812, 4294901760
    %v1084 = vsub.f32 %v812, %v1083
    %1085 = vmatpush.msra.mxu0 %v1084
    %v1086 = vand.u32 %v811, 4294901760
    %v1087 = vsub.f32 %v811, %v1086
    %1088 = vmatpush.msra.mxu0 %v1087
    %v1089 = vand.u32 %v810, 4294901760
    %v1090 = vsub.f32 %v810, %v1089
    %1091 = vmatpush.msra.mxu0 %v1090
    %v1092 = vand.u32 %v809, 4294901760
    %v1093 = vsub.f32 %v809, %v1092
    %1094 = vmatpush.msra.mxu0 %v1093
    %v1095 = vand.u32 %v808, 4294901760
    %v1096 = vsub.f32 %v808, %v1095
    %1097 = vmatpush.msra.mxu0 %v1096
    %v1098 = vand.u32 %v807, 4294901760
    %v1099 = vsub.f32 %v807, %v1098
    %1100 = vmatpush.msra.mxu0 %v1099
    %v1101 = vand.u32 %v806, 4294901760
    %v1102 = vsub.f32 %v806, %v1101
    %1103 = vmatpush.msra.mxu0 %v1102
    %v1104 = vand.u32 %v805, 4294901760
    %v1105 = vsub.f32 %v805, %v1104
    %1106 = vmatpush.msra.mxu0 %v1105
    %v1107 = vand.u32 %v804, 4294901760
    %v1108 = vsub.f32 %v804, %v1107
    %1109 = vmatpush.msra.mxu0 %v1108
    %v1110 = vand.u32 %v803, 4294901760
    %v1111 = vsub.f32 %v803, %v1110
    %1112 = vmatpush.msra.mxu0 %v1111
    %v1113 = vand.u32 %v802, 4294901760
    %v1114 = vsub.f32 %v802, %v1113
    %1115 = vmatpush.msra.mxu0 %v1114
    %v1116 = vand.u32 %v801, 4294901760
    %v1117 = vsub.f32 %v801, %v1116
    %1118 = vmatpush.msra.mxu0 %v1117
    %v1119 = vand.u32 %v800, 4294901760
    %v1120 = vsub.f32 %v800, %v1119
    %1121 = vmatpush.msra.mxu0 %v1120
    %v1122 = vand.u32 %v799, 4294901760
    %v1123 = vsub.f32 %v799, %v1122
    %1124 = vmatpush.msra.mxu0 %v1123
    %v1125 = vand.u32 %v798, 4294901760
    %v1126 = vsub.f32 %v798, %v1125
    %1127 = vmatpush.msra.mxu0 %v1126
    %v1128 = vand.u32 %v814, 4294901760
    %v1129 = vsub.f32 %v814, %v1128
    %1130 = vmatmul.f32.gmra.mxu0 %v1129
    %v1131 = vpop.f32.mrf.mxu0
    %v1132 = vadd.f32 %v1050, %v1131
    %v1133 = vand.u32 %v815, 4294901760
    %v1134 = vsub.f32 %v815, %v1133
    %1135 = vmatmul.f32.gmra.mxu0 %v1134
    %v1136 = vpop.f32.mrf.mxu0
    %v1137 = vadd.f32 %v1054, %v1136
    %v1138 = vand.u32 %v816, 4294901760
    %v1139 = vsub.f32 %v816, %v1138
    %1140 = vmatmul.f32.gmra.mxu0 %v1139
    %v1141 = vpop.f32.mrf.mxu0
    %v1142 = vadd.f32 %v1058, %v1141
    %v1143 = vand.u32 %v817, 4294901760
    %v1144 = vsub.f32 %v817, %v1143
    %1145 = vmatmul.f32.gmra.mxu0 %v1144
    %v1146 = vpop.f32.mrf.mxu0
    %v1147 = vadd.f32 %v1062, %v1146
    %v1148 = vand.u32 %v818, 4294901760
    %v1149 = vsub.f32 %v818, %v1148
    %1150 = vmatmul.f32.gmra.mxu0 %v1149
    %v1151 = vpop.f32.mrf.mxu0
    %v1152 = vadd.f32 %v1066, %v1151
    %v1153 = vand.u32 %v819, 4294901760
    %v1154 = vsub.f32 %v819, %v1153
    %1155 = vmatmul.f32.gmra.mxu0 %v1154
    %v1156 = vpop.f32.mrf.mxu0
    %v1157 = vadd.f32 %v1070, %v1156
    %v1158 = vand.u32 %v820, 4294901760
    %v1159 = vsub.f32 %v820, %v1158
    %1160 = vmatmul.f32.gmra.mxu0 %v1159
    %v1161 = vpop.f32.mrf.mxu0
    %v1162 = vadd.f32 %v1074, %v1161
    %v1163 = vand.u32 %v821, 4294901760
    %v1164 = vsub.f32 %v821, %v1163
    %1165 = vmatmul.f32.gmra.mxu0 %v1164
    %v1166 = vpop.f32.mrf.mxu0
    %v1167 = vadd.f32 %v1078, %v1166
    %1168 = vdwg.mxu0
    %v1169 = vand.u32 %v813, 4294901760
    %1170 = vmatpush.msra.mxu0 %v1169
    %v1171 = vand.u32 %v812, 4294901760
    %1172 = vmatpush.msra.mxu0 %v1171
    %v1173 = vand.u32 %v811, 4294901760
    %1174 = vmatpush.msra.mxu0 %v1173
    %v1175 = vand.u32 %v810, 4294901760
    %1176 = vmatpush.msra.mxu0 %v1175
    %v1177 = vand.u32 %v809, 4294901760
    %1178 = vmatpush.msra.mxu0 %v1177
    %v1179 = vand.u32 %v808, 4294901760
    %1180 = vmatpush.msra.mxu0 %v1179
    %v1181 = vand.u32 %v807, 4294901760
    %1182 = vmatpush.msra.mxu0 %v1181
    %v1183 = vand.u32 %v806, 4294901760
    %1184 = vmatpush.msra.mxu0 %v1183
    %v1185 = vand.u32 %v805, 4294901760
    %1186 = vmatpush.msra.mxu0 %v1185
    %v1187 = vand.u32 %v804, 4294901760
    %1188 = vmatpush.msra.mxu0 %v1187
    %v1189 = vand.u32 %v803, 4294901760
    %1190 = vmatpush.msra.mxu0 %v1189
    %v1191 = vand.u32 %v802, 4294901760
    %1192 = vmatpush.msra.mxu0 %v1191
    %v1193 = vand.u32 %v801, 4294901760
    %1194 = vmatpush.msra.mxu0 %v1193
    %v1195 = vand.u32 %v800, 4294901760
    %1196 = vmatpush.msra.mxu0 %v1195
    %v1197 = vand.u32 %v799, 4294901760
    %1198 = vmatpush.msra.mxu0 %v1197
    %v1199 = vand.u32 %v798, 4294901760
    %1200 = vmatpush.msra.mxu0 %v1199
    %v1201 = vand.u32 %v814, 4294901760
    %v1202 = vsub.f32 %v814, %v1201
    %v1203 = vand.u32 %v1202, 4294901760
    %1204 = vmatmul.f32.gmra.mxu0 %v1203
    %v1205 = vpop.f32.mrf.mxu0
    %v1206 = vadd.f32 %v1132, %v1205
    %v1207 = vand.u32 %v815, 4294901760
    %v1208 = vsub.f32 %v815, %v1207
    %v1209 = vand.u32 %v1208, 4294901760
    %1210 = vmatmul.f32.gmra.mxu0 %v1209
    %v1211 = vpop.f32.mrf.mxu0
    %v1212 = vadd.f32 %v1137, %v1211
    %v1213 = vand.u32 %v816, 4294901760
    %v1214 = vsub.f32 %v816, %v1213
    %v1215 = vand.u32 %v1214, 4294901760
    %1216 = vmatmul.f32.gmra.mxu0 %v1215
    %v1217 = vpop.f32.mrf.mxu0
    %v1218 = vadd.f32 %v1142, %v1217
    %v1219 = vand.u32 %v817, 4294901760
    %v1220 = vsub.f32 %v817, %v1219
    %v1221 = vand.u32 %v1220, 4294901760
    %1222 = vmatmul.f32.gmra.mxu0 %v1221
    %v1223 = vpop.f32.mrf.mxu0
    %v1224 = vadd.f32 %v1147, %v1223
    %v1225 = vand.u32 %v818, 4294901760
    %v1226 = vsub.f32 %v818, %v1225
    %v1227 = vand.u32 %v1226, 4294901760
    %1228 = vmatmul.f32.gmra.mxu0 %v1227
    %v1229 = vpop.f32.mrf.mxu0
    %v1230 = vadd.f32 %v1152, %v1229
    %v1231 = vand.u32 %v819, 4294901760
    %v1232 = vsub.f32 %v819, %v1231
    %v1233 = vand.u32 %v1232, 4294901760
    %1234 = vmatmul.f32.gmra.mxu0 %v1233
    %v1235 = vpop.f32.mrf.mxu0
    %v1236 = vadd.f32 %v1157, %v1235
    %v1237 = vand.u32 %v820, 4294901760
    %v1238 = vsub.f32 %v820, %v1237
    %v1239 = vand.u32 %v1238, 4294901760
    %1240 = vmatmul.f32.gmra.mxu0 %v1239
    %v1241 = vpop.f32.mrf.mxu0
    %v1242 = vadd.f32 %v1162, %v1241
    %v1243 = vand.u32 %v821, 4294901760
    %v1244 = vsub.f32 %v821, %v1243
    %v1245 = vand.u32 %v1244, 4294901760
    %1246 = vmatmul.f32.gmra.mxu0 %v1245
    %v1247 = vpop.f32.mrf.mxu0
    %v1248 = vadd.f32 %v1167, %v1247
    %1249 = vdwg.mxu0
    %v1250 = vand.u32 %v813, 4294901760
    %v1251 = vsub.f32 %v813, %v1250
    %v1252 = vand.u32 %v1251, 4294901760
    %1253 = vmatpush.msra.mxu0 %v1252
    %v1254 = vand.u32 %v812, 4294901760
    %v1255 = vsub.f32 %v812, %v1254
    %v1256 = vand.u32 %v1255, 4294901760
    %1257 = vmatpush.msra.mxu0 %v1256
    %v1258 = vand.u32 %v811, 4294901760
    %v1259 = vsub.f32 %v811, %v1258
    %v1260 = vand.u32 %v1259, 4294901760
    %1261 = vmatpush.msra.mxu0 %v1260
    %v1262 = vand.u32 %v810, 4294901760
    %v1263 = vsub.f32 %v810, %v1262
    %v1264 = vand.u32 %v1263, 4294901760
    %1265 = vmatpush.msra.mxu0 %v1264
    %v1266 = vand.u32 %v809, 4294901760
    %v1267 = vsub.f32 %v809, %v1266
    %v1268 = vand.u32 %v1267, 4294901760
    %1269 = vmatpush.msra.mxu0 %v1268
    %v1270 = vand.u32 %v808, 4294901760
    %v1271 = vsub.f32 %v808, %v1270
    %v1272 = vand.u32 %v1271, 4294901760
    %1273 = vmatpush.msra.mxu0 %v1272
    %v1274 = vand.u32 %v807, 4294901760
    %v1275 = vsub.f32 %v807, %v1274
    %v1276 = vand.u32 %v1275, 4294901760
    %1277 = vmatpush.msra.mxu0 %v1276
    %v1278 = vand.u32 %v806, 4294901760
    %v1279 = vsub.f32 %v806, %v1278
    %v1280 = vand.u32 %v1279, 4294901760
    %1281 = vmatpush.msra.mxu0 %v1280
    %v1282 = vand.u32 %v805, 4294901760
    %v1283 = vsub.f32 %v805, %v1282
    %v1284 = vand.u32 %v1283, 4294901760
    %1285 = vmatpush.msra.mxu0 %v1284
    %v1286 = vand.u32 %v804, 4294901760
    %v1287 = vsub.f32 %v804, %v1286
    %v1288 = vand.u32 %v1287, 4294901760
    %1289 = vmatpush.msra.mxu0 %v1288
    %v1290 = vand.u32 %v803, 4294901760
    %v1291 = vsub.f32 %v803, %v1290
    %v1292 = vand.u32 %v1291, 4294901760
    %1293 = vmatpush.msra.mxu0 %v1292
    %v1294 = vand.u32 %v802, 4294901760
    %v1295 = vsub.f32 %v802, %v1294
    %v1296 = vand.u32 %v1295, 4294901760
    %1297 = vmatpush.msra.mxu0 %v1296
    %v1298 = vand.u32 %v801, 4294901760
    %v1299 = vsub.f32 %v801, %v1298
    %v1300 = vand.u32 %v1299, 4294901760
    %1301 = vmatpush.msra.mxu0 %v1300
    %v1302 = vand.u32 %v800, 4294901760
    %v1303 = vsub.f32 %v800, %v1302
    %v1304 = vand.u32 %v1303, 4294901760
    %1305 = vmatpush.msra.mxu0 %v1304
    %v1306 = vand.u32 %v799, 4294901760
    %v1307 = vsub.f32 %v799, %v1306
    %v1308 = vand.u32 %v1307, 4294901760
    %1309 = vmatpush.msra.mxu0 %v1308
    %v1310 = vand.u32 %v798, 4294901760
    %v1311 = vsub.f32 %v798, %v1310
    %v1312 = vand.u32 %v1311, 4294901760
    %1313 = vmatpush.msra.mxu0 %v1312
    %v1314 = vand.u32 %v814, 4294901760
    %1315 = vmatmul.f32.gmra.mxu0 %v1314
    %v1316 = vpop.f32.mrf.mxu0
    %v1317 = vadd.f32 %v1206, %v1316
    %v1318 = vand.u32 %v815, 4294901760
    %1319 = vmatmul.f32.gmra.mxu0 %v1318
    %v1320 = vpop.f32.mrf.mxu0
    %v1321 = vadd.f32 %v1212, %v1320
    %v1322 = vand.u32 %v816, 4294901760
    %1323 = vmatmul.f32.gmra.mxu0 %v1322
    %v1324 = vpop.f32.mrf.mxu0
    %v1325 = vadd.f32 %v1218, %v1324
    %v1326 = vand.u32 %v817, 4294901760
    %1327 = vmatmul.f32.gmra.mxu0 %v1326
    %v1328 = vpop.f32.mrf.mxu0
    %v1329 = vadd.f32 %v1224, %v1328
    %v1330 = vand.u32 %v818, 4294901760
    %1331 = vmatmul.f32.gmra.mxu0 %v1330
    %v1332 = vpop.f32.mrf.mxu0
    %v1333 = vadd.f32 %v1230, %v1332
    %v1334 = vand.u32 %v819, 4294901760
    %1335 = vmatmul.f32.gmra.mxu0 %v1334
    %v1336 = vpop.f32.mrf.mxu0
    %v1337 = vadd.f32 %v1236, %v1336
    %v1338 = vand.u32 %v820, 4294901760
    %1339 = vmatmul.f32.gmra.mxu0 %v1338
    %v1340 = vpop.f32.mrf.mxu0
    %v1341 = vadd.f32 %v1242, %v1340
    %v1342 = vand.u32 %v821, 4294901760
    %1343 = vmatmul.f32.gmra.mxu0 %v1342
    %v1344 = vpop.f32.mrf.mxu0
    %v1345 = vadd.f32 %v1248, %v1344
    %1346 = vdwg.mxu0
    %v1347 = vand.u32 %v813, 4294901760
    %1348 = vmatpush.msra.mxu0 %v1347
    %v1349 = vand.u32 %v812, 4294901760
    %1350 = vmatpush.msra.mxu0 %v1349
    %v1351 = vand.u32 %v811, 4294901760
    %1352 = vmatpush.msra.mxu0 %v1351
    %v1353 = vand.u32 %v810, 4294901760
    %1354 = vmatpush.msra.mxu0 %v1353
    %v1355 = vand.u32 %v809, 4294901760
    %1356 = vmatpush.msra.mxu0 %v1355
    %v1357 = vand.u32 %v808, 4294901760
    %1358 = vmatpush.msra.mxu0 %v1357
    %v1359 = vand.u32 %v807, 4294901760
    %1360 = vmatpush.msra.mxu0 %v1359
    %v1361 = vand.u32 %v806, 4294901760
    %1362 = vmatpush.msra.mxu0 %v1361
    %v1363 = vand.u32 %v805, 4294901760
    %1364 = vmatpush.msra.mxu0 %v1363
    %v1365 = vand.u32 %v804, 4294901760
    %1366 = vmatpush.msra.mxu0 %v1365
    %v1367 = vand.u32 %v803, 4294901760
    %1368 = vmatpush.msra.mxu0 %v1367
    %v1369 = vand.u32 %v802, 4294901760
    %1370 = vmatpush.msra.mxu0 %v1369
    %v1371 = vand.u32 %v801, 4294901760
    %1372 = vmatpush.msra.mxu0 %v1371
    %v1373 = vand.u32 %v800, 4294901760
    %1374 = vmatpush.msra.mxu0 %v1373
    %v1375 = vand.u32 %v799, 4294901760
    %1376 = vmatpush.msra.mxu0 %v1375
    %v1377 = vand.u32 %v798, 4294901760
    %1378 = vmatpush.msra.mxu0 %v1377
    %v1379 = vand.u32 %v814, 4294901760
    %1380 = vmatmul.f32.gmra.mxu0 %v1379
    %v1381 = vpop.f32.mrf.mxu0
    %v1382 = vadd.f32 %v1317, %v1381
    %v1383 = vand.u32 %v815, 4294901760
    %1384 = vmatmul.f32.gmra.mxu0 %v1383
    %v1385 = vpop.f32.mrf.mxu0
    %v1386 = vadd.f32 %v1321, %v1385
    %v1387 = vand.u32 %v816, 4294901760
    %1388 = vmatmul.f32.gmra.mxu0 %v1387
    %v1389 = vpop.f32.mrf.mxu0
    %v1390 = vadd.f32 %v1325, %v1389
    %v1391 = vand.u32 %v817, 4294901760
    %1392 = vmatmul.f32.gmra.mxu0 %v1391
    %v1393 = vpop.f32.mrf.mxu0
    %v1394 = vadd.f32 %v1329, %v1393
    %v1395 = vand.u32 %v818, 4294901760
    %1396 = vmatmul.f32.gmra.mxu0 %v1395
    %v1397 = vpop.f32.mrf.mxu0
    %v1398 = vadd.f32 %v1333, %v1397
    %v1399 = vand.u32 %v819, 4294901760
    %1400 = vmatmul.f32.gmra.mxu0 %v1399
    %v1401 = vpop.f32.mrf.mxu0
    %v1402 = vadd.f32 %v1337, %v1401
    %v1403 = vand.u32 %v820, 4294901760
    %1404 = vmatmul.f32.gmra.mxu0 %v1403
    %v1405 = vpop.f32.mrf.mxu0
    %v1406 = vadd.f32 %v1341, %v1405
    %v1407 = vand.u32 %v821, 4294901760
    %1408 = vmatmul.f32.gmra.mxu0 %v1407
    %v1409 = vpop.f32.mrf.mxu0
    %v1410 = vadd.f32 %v1345, %v1409
    %1411 = vdwg.mxu0
    %v1412 = vmax.f32 %v1382, 0.0
    %v1413 = vmax.f32 %v1386, 0.0
    %v1414 = vmax.f32 %v1390, 0.0
    %v1415 = vmax.f32 %v1394, 0.0
    %v1416 = vmax.f32 %v1398, 0.0
    %v1417 = vmax.f32 %v1402, 0.0
    %v1418 = vmax.f32 %v1406, 0.0
    %v1419 = vmax.f32 %v1410, 0.0
    %v1420 = vld [vmem:[%s3] sm:$0xff]
    %1421 = vset.pattern.permute.xlu0 2
    %1422 = vperm.xlu0 %1421, %v22
    %v1423 = vpop.permute.xlu0 %1422
    %vm1425 = vcmask 523264
    %v1427 = vsel %vm1425, %v1420, 0
    %1429 = vmatpush.msra.mxu0 0.0
    %1430 = vmatpush.msra.mxu0 0.0
    %1431 = vmatpush.msra.mxu0 0.0
    %1432 = vmatpush.msra.mxu0 0.0
    %1433 = vmatpush.msra.mxu0 0.0
    %1434 = vmatpush.msra.mxu0 0.0
    %1435 = vmatpush.msra.mxu0 0.0
    %1436 = vmatpush.msra.mxu0 0.0
    %v1437 = vand.u32 %v1419, 4294901760
    %1438 = vmatpush.msra.mxu0 %v1437
    %v1439 = vand.u32 %v1418, 4294901760
    %1440 = vmatpush.msra.mxu0 %v1439
    %v1441 = vand.u32 %v1417, 4294901760
    %1442 = vmatpush.msra.mxu0 %v1441
    %v1443 = vand.u32 %v1416, 4294901760
    %1444 = vmatpush.msra.mxu0 %v1443
    %v1445 = vand.u32 %v1415, 4294901760
    %1446 = vmatpush.msra.mxu0 %v1445
    %v1447 = vand.u32 %v1414, 4294901760
    %1448 = vmatpush.msra.mxu0 %v1447
    %v1449 = vand.u32 %v1413, 4294901760
    %1450 = vmatpush.msra.mxu0 %v1449
    %v1451 = vand.u32 %v1412, 4294901760
    %1452 = vmatpush.msra.mxu0 %v1451
    %v1453 = vand.u32 %v1427, 4294901760
    %v1454 = vsub.f32 %v1427, %v1453
    %v1455 = vand.u32 %v1454, 4294901760
    %v1456 = vsub.f32 %v1454, %v1455
    %v1457 = vand.u32 %v1456, 4294901760
    %1458 = vmatmul.f32.gmra.mxu0 %v1457
    %v1459 = vpop.f32.mrf.mxu0
    %v1460 = vadd.f32 %v1423, %v1459
    %1461 = vdwg.mxu0
    %1462 = vmatpush.msra.mxu0 0.0
    %1463 = vmatpush.msra.mxu0 0.0
    %1464 = vmatpush.msra.mxu0 0.0
    %1465 = vmatpush.msra.mxu0 0.0
    %1466 = vmatpush.msra.mxu0 0.0
    %1467 = vmatpush.msra.mxu0 0.0
    %1468 = vmatpush.msra.mxu0 0.0
    %1469 = vmatpush.msra.mxu0 0.0
    %v1470 = vand.u32 %v1419, 4294901760
    %v1471 = vsub.f32 %v1419, %v1470
    %v1472 = vand.u32 %v1471, 4294901760
    %v1473 = vsub.f32 %v1471, %v1472
    %v1474 = vand.u32 %v1473, 4294901760
    %1475 = vmatpush.msra.mxu0 %v1474
    %v1476 = vand.u32 %v1418, 4294901760
    %v1477 = vsub.f32 %v1418, %v1476
    %v1478 = vand.u32 %v1477, 4294901760
    %v1479 = vsub.f32 %v1477, %v1478
    %v1480 = vand.u32 %v1479, 4294901760
    %1481 = vmatpush.msra.mxu0 %v1480
    %v1482 = vand.u32 %v1417, 4294901760
    %v1483 = vsub.f32 %v1417, %v1482
    %v1484 = vand.u32 %v1483, 4294901760
    %v1485 = vsub.f32 %v1483, %v1484
    %v1486 = vand.u32 %v1485, 4294901760
    %1487 = vmatpush.msra.mxu0 %v1486
    %v1488 = vand.u32 %v1416, 4294901760
    %v1489 = vsub.f32 %v1416, %v1488
    %v1490 = vand.u32 %v1489, 4294901760
    %v1491 = vsub.f32 %v1489, %v1490
    %v1492 = vand.u32 %v1491, 4294901760
    %1493 = vmatpush.msra.mxu0 %v1492
    %v1494 = vand.u32 %v1415, 4294901760
    %v1495 = vsub.f32 %v1415, %v1494
    %v1496 = vand.u32 %v1495, 4294901760
    %v1497 = vsub.f32 %v1495, %v1496
    %v1498 = vand.u32 %v1497, 4294901760
    %1499 = vmatpush.msra.mxu0 %v1498
    %v1500 = vand.u32 %v1414, 4294901760
    %v1501 = vsub.f32 %v1414, %v1500
    %v1502 = vand.u32 %v1501, 4294901760
    %v1503 = vsub.f32 %v1501, %v1502
    %v1504 = vand.u32 %v1503, 4294901760
    %1505 = vmatpush.msra.mxu0 %v1504
    %v1506 = vand.u32 %v1413, 4294901760
    %v1507 = vsub.f32 %v1413, %v1506
    %v1508 = vand.u32 %v1507, 4294901760
    %v1509 = vsub.f32 %v1507, %v1508
    %v1510 = vand.u32 %v1509, 4294901760
    %1511 = vmatpush.msra.mxu0 %v1510
    %v1512 = vand.u32 %v1412, 4294901760
    %v1513 = vsub.f32 %v1412, %v1512
    %v1514 = vand.u32 %v1513, 4294901760
    %v1515 = vsub.f32 %v1513, %v1514
    %v1516 = vand.u32 %v1515, 4294901760
    %1517 = vmatpush.msra.mxu0 %v1516
    %v1518 = vand.u32 %v1427, 4294901760
    %1519 = vmatmul.f32.gmra.mxu0 %v1518
    %v1520 = vpop.f32.mrf.mxu0
    %v1521 = vadd.f32 %v1460, %v1520
    %1522 = vdwg.mxu0
    %1523 = vmatpush.msra.mxu0 0.0
    %1524 = vmatpush.msra.mxu0 0.0
    %1525 = vmatpush.msra.mxu0 0.0
    %1526 = vmatpush.msra.mxu0 0.0
    %1527 = vmatpush.msra.mxu0 0.0
    %1528 = vmatpush.msra.mxu0 0.0
    %1529 = vmatpush.msra.mxu0 0.0
    %1530 = vmatpush.msra.mxu0 0.0
    %v1531 = vand.u32 %v1419, 4294901760
    %v1532 = vsub.f32 %v1419, %v1531
    %1533 = vmatpush.msra.mxu0 %v1532
    %v1534 = vand.u32 %v1418, 4294901760
    %v1535 = vsub.f32 %v1418, %v1534
    %1536 = vmatpush.msra.mxu0 %v1535
    %v1537 = vand.u32 %v1417, 4294901760
    %v1538 = vsub.f32 %v1417, %v1537
    %1539 = vmatpush.msra.mxu0 %v1538
    %v1540 = vand.u32 %v1416, 4294901760
    %v1541 = vsub.f32 %v1416, %v1540
    %1542 = vmatpush.msra.mxu0 %v1541
    %v1543 = vand.u32 %v1415, 4294901760
    %v1544 = vsub.f32 %v1415, %v1543
    %1545 = vmatpush.msra.mxu0 %v1544
    %v1546 = vand.u32 %v1414, 4294901760
    %v1547 = vsub.f32 %v1414, %v1546
    %1548 = vmatpush.msra.mxu0 %v1547
    %v1549 = vand.u32 %v1413, 4294901760
    %v1550 = vsub.f32 %v1413, %v1549
    %1551 = vmatpush.msra.mxu0 %v1550
    %v1552 = vand.u32 %v1412, 4294901760
    %v1553 = vsub.f32 %v1412, %v1552
    %1554 = vmatpush.msra.mxu0 %v1553
    %v1555 = vand.u32 %v1427, 4294901760
    %v1556 = vsub.f32 %v1427, %v1555
    %1557 = vmatmul.f32.gmra.mxu0 %v1556
    %v1558 = vpop.f32.mrf.mxu0
    %v1559 = vadd.f32 %v1521, %v1558
    %1560 = vdwg.mxu0
    %1561 = vmatpush.msra.mxu0 0.0
    %1562 = vmatpush.msra.mxu0 0.0
    %1563 = vmatpush.msra.mxu0 0.0
    %1564 = vmatpush.msra.mxu0 0.0
    %1565 = vmatpush.msra.mxu0 0.0
    %1566 = vmatpush.msra.mxu0 0.0
    %1567 = vmatpush.msra.mxu0 0.0
    %1568 = vmatpush.msra.mxu0 0.0
    %v1569 = vand.u32 %v1419, 4294901760
    %1570 = vmatpush.msra.mxu0 %v1569
    %v1571 = vand.u32 %v1418, 4294901760
    %1572 = vmatpush.msra.mxu0 %v1571
    %v1573 = vand.u32 %v1417, 4294901760
    %1574 = vmatpush.msra.mxu0 %v1573
    %v1575 = vand.u32 %v1416, 4294901760
    %1576 = vmatpush.msra.mxu0 %v1575
    %v1577 = vand.u32 %v1415, 4294901760
    %1578 = vmatpush.msra.mxu0 %v1577
    %v1579 = vand.u32 %v1414, 4294901760
    %1580 = vmatpush.msra.mxu0 %v1579
    %v1581 = vand.u32 %v1413, 4294901760
    %1582 = vmatpush.msra.mxu0 %v1581
    %v1583 = vand.u32 %v1412, 4294901760
    %1584 = vmatpush.msra.mxu0 %v1583
    %v1585 = vand.u32 %v1427, 4294901760
    %v1586 = vsub.f32 %v1427, %v1585
    %v1587 = vand.u32 %v1586, 4294901760
    %1588 = vmatmul.f32.gmra.mxu0 %v1587
    %v1589 = vpop.f32.mrf.mxu0
    %v1590 = vadd.f32 %v1559, %v1589
    %1591 = vdwg.mxu0
    %1592 = vmatpush.msra.mxu0 0.0
    %1593 = vmatpush.msra.mxu0 0.0
    %1594 = vmatpush.msra.mxu0 0.0
    %1595 = vmatpush.msra.mxu0 0.0
    %1596 = vmatpush.msra.mxu0 0.0
    %1597 = vmatpush.msra.mxu0 0.0
    %1598 = vmatpush.msra.mxu0 0.0
    %1599 = vmatpush.msra.mxu0 0.0
    %v1600 = vand.u32 %v1419, 4294901760
    %v1601 = vsub.f32 %v1419, %v1600
    %v1602 = vand.u32 %v1601, 4294901760
    %1603 = vmatpush.msra.mxu0 %v1602
    %v1604 = vand.u32 %v1418, 4294901760
    %v1605 = vsub.f32 %v1418, %v1604
    %v1606 = vand.u32 %v1605, 4294901760
    %1607 = vmatpush.msra.mxu0 %v1606
    %v1608 = vand.u32 %v1417, 4294901760
    %v1609 = vsub.f32 %v1417, %v1608
    %v1610 = vand.u32 %v1609, 4294901760
    %1611 = vmatpush.msra.mxu0 %v1610
    %v1612 = vand.u32 %v1416, 4294901760
    %v1613 = vsub.f32 %v1416, %v1612
    %v1614 = vand.u32 %v1613, 4294901760
    %1615 = vmatpush.msra.mxu0 %v1614
    %v1616 = vand.u32 %v1415, 4294901760
    %v1617 = vsub.f32 %v1415, %v1616
    %v1618 = vand.u32 %v1617, 4294901760
    %1619 = vmatpush.msra.mxu0 %v1618
    %v1620 = vand.u32 %v1414, 4294901760
    %v1621 = vsub.f32 %v1414, %v1620
    %v1622 = vand.u32 %v1621, 4294901760
    %1623 = vmatpush.msra.mxu0 %v1622
    %v1624 = vand.u32 %v1413, 4294901760
    %v1625 = vsub.f32 %v1413, %v1624
    %v1626 = vand.u32 %v1625, 4294901760
    %1627 = vmatpush.msra.mxu0 %v1626
    %v1628 = vand.u32 %v1412, 4294901760
    %v1629 = vsub.f32 %v1412, %v1628
    %v1630 = vand.u32 %v1629, 4294901760
    %1631 = vmatpush.msra.mxu0 %v1630
    %v1632 = vand.u32 %v1427, 4294901760
    %1633 = vmatmul.f32.gmra.mxu0 %v1632
    %v1634 = vpop.f32.mrf.mxu0
    %v1635 = vadd.f32 %v1590, %v1634
    %1636 = vdwg.mxu0
    %1637 = vmatpush.msra.mxu0 0.0
    %1638 = vmatpush.msra.mxu0 0.0
    %1639 = vmatpush.msra.mxu0 0.0
    %1640 = vmatpush.msra.mxu0 0.0
    %1641 = vmatpush.msra.mxu0 0.0
    %1642 = vmatpush.msra.mxu0 0.0
    %1643 = vmatpush.msra.mxu0 0.0
    %1644 = vmatpush.msra.mxu0 0.0
    %v1645 = vand.u32 %v1419, 4294901760
    %1646 = vmatpush.msra.mxu0 %v1645
    %v1647 = vand.u32 %v1418, 4294901760
    %1648 = vmatpush.msra.mxu0 %v1647
    %v1649 = vand.u32 %v1417, 4294901760
    %1650 = vmatpush.msra.mxu0 %v1649
    %v1651 = vand.u32 %v1416, 4294901760
    %1652 = vmatpush.msra.mxu0 %v1651
    %v1653 = vand.u32 %v1415, 4294901760
    %1654 = vmatpush.msra.mxu0 %v1653
    %v1655 = vand.u32 %v1414, 4294901760
    %1656 = vmatpush.msra.mxu0 %v1655
    %v1657 = vand.u32 %v1413, 4294901760
    %1658 = vmatpush.msra.mxu0 %v1657
    %v1659 = vand.u32 %v1412, 4294901760
    %1660 = vmatpush.msra.mxu0 %v1659
    %v1661 = vand.u32 %v1427, 4294901760
    %1662 = vmatmul.f32.gmra.mxu0 %v1661
    %v1663 = vpop.f32.mrf.mxu0
    %v1664 = vadd.f32 %v1635, %v1663
    %1665 = vdwg.mxu0
    %vm1666 = vcmask 64512
    %1667 = vst.msk [vmem:[#allocation2] sm:$0xff] %vm1666, %v1664
    // Predicated region
    $region22: #{tpu_custom_call.1} parent=1 // pred_check
      _
    $region23: #{tpu_custom_call.1} parent=1 // pred_check_branch
      %1669 = sbr.rel (0) target = $region25
    $region24: #{tpu_custom_call.1} parent=1 // pred_region
      %1671 = vsyncadd [#allocation3], 0
      %s1673 = sshll.u32 [#allocation2], 4
      %s1674 = int_to_ptr.vmem [resolvable:$true] %s1673
      %s1675 = sshll.u32 %s5, 4
      %s1676 = int_to_ptr.hbm [resolvable:$true] %s1675
      %1678 = dma.vmem_to_hbm [thread:$0]  %s1674, 128, %s1676, [#allocation3]
    $region25: #{tpu_custom_call.1} parent=1 // pred_fallthru
      _
    // Predicated region
    $region26: #{tpu_custom_call.1} parent=1 // pred_check
      _
    $region27: #{tpu_custom_call.1} parent=1 // pred_check_branch
      %1680 = sbr.rel (0) target = $region29
    $region28: #{tpu_custom_call.1} parent=1 // pred_region
      %1682 = dma.done [#allocation3], 128
    $region29: #{tpu_custom_call.1} parent=1 // pred_fallthru
      _
    %1683 = vsyncpa [#allocation3], 1

</llo_original>
